<compile_context>
chip_gen: v7x
topology: tpu7x:2x2x1
jax: 0.10.0
libtpu: 0.0.40
codegen_flags: <defaults>
</compile_context>

<pallas_src>
import functools

import jax
import jax.numpy as jnp
from jax.experimental import pallas as pl
from jax.experimental.pallas import tpu as pltpu


def _crp_kernel(x_ref, w_ref, o_ref, pad_ref, *, n_stages, H, W, C, WOFF):
    # x_ref   : (1, H, W, C)              one batch element (NHWC)
    # w_ref   : (n_stages, C, C)          stacked 1x1-conv weights [in, out],
    #                                     already cast to the matmul dtype
    # o_ref   : (1, H, W, C)              output / residual accumulator
    # pad_ref : (H + 4, WOFF + W + 2, C)  pool scratch, padded in H and W
    x = x_ref[0]                                   # (H, W, C)
    dtype = x.dtype

    # -inf borders of the merged pool scratch: written once per grid step.
    # Together with the per-stage interior store they cover every element the
    # 5 W-shifted taps ever read; the interior is fully rewritten each stage.
    col_border = jnp.full((H + 4, 2, C), -jnp.inf, dtype)
    pad_ref[:, WOFF - 2:WOFF, :] = col_border               # left  (2 cols)
    pad_ref[:, WOFF + W:WOFF + W + 2, :] = col_border       # right (2 cols)
    row_border = jnp.full((2, W, C), -jnp.inf, dtype)
    pad_ref[0:2, WOFF:WOFF + W, :] = row_border             # top   (2 rows)
    pad_ref[H + 2:H + 4, WOFF:WOFF + W, :] = row_border     # bottom(2 rows)

    # Residual accumulator lives in the output ref (ref-backed, no spills).
    o_ref[0] = x
    top = x

    for i in range(n_stages):
        # ---- separable 5x5 max-pool, stride 1, padding 2 (-inf padded) ----
        # Single interior store per stage, at a sublane-aligned offset (WOFF).
        pad_ref[2:H + 2, WOFF:WOFF + W, :] = top
        # 1) horizontal: 5-wide max along W over all H+4 rows (the two -inf
        #    border rows stay -inf and are neutral for the vertical max).
        rowmax = pad_ref[:, WOFF - 2:WOFF - 2 + W, :]        # (H+4, W, C)
        for d in (WOFF - 1, WOFF, WOFF + 1, WOFF + 2):
            rowmax = jnp.maximum(rowmax, pad_ref[:, d:d + W, :])
        # 2) vertical: 5-tall max along H via major-dim slices of the SSA
        #    value -- no scratch store/loads, just vreg selection.
        pooled = rowmax[2:H + 2]                             # centre tap
        for d in (0, 1, 3, 4):
            pooled = jnp.maximum(pooled, rowmax[d:d + H])
        # ---- 1x1 conv (bias=False) == channel matmul on the MXU ----------
        # Reshape the f32 tile (layout-preserving for W % 8 == 0), then cast
        # to the weight dtype (bf16) so the MXU runs at native rate with f32
        # accumulation.
        p2 = pooled.reshape(H * W, C).astype(w_ref.dtype)
        top = jnp.dot(p2, w_ref[i], preferred_element_type=jnp.float32)
        top = top.astype(dtype).reshape(H, W, C)
        # ---- residual accumulate directly into the output ref ------------
        o_ref[0] = o_ref[0] + top


def crp_block(x_nhwc, weights, *, matmul_dtype=jnp.bfloat16,
              vmem_limit_bytes=None):
    """CRPBlock forward.

    x_nhwc : (B, H, W, C)
    weights: (n_stages, C, C) in [in, out] order (torch w[:, :, 0, 0].T)
    matmul_dtype: dtype of the MXU matmul operands (f32 accumulation always).
    """
    B, H, W, C = x_nhwc.shape
    n_stages = weights.shape[0]
    WOFF = 8  # sublane-aligned interior start of the pool scratch

    w = weights.astype(matmul_dtype)

    kernel = functools.partial(_crp_kernel, n_stages=n_stages,
                               H=H, W=W, C=C, WOFF=WOFF)

    cp_kwargs = dict(dimension_semantics=("parallel",))
    if vmem_limit_bytes is not None:
        cp_kwargs["vmem_limit_bytes"] = vmem_limit_bytes

    return pl.pallas_call(
        kernel,
        out_shape=jax.ShapeDtypeStruct((B, H, W, C), x_nhwc.dtype),
        grid_spec=pltpu.PrefetchScalarGridSpec(
            num_scalar_prefetch=0,
            grid=(B,),
            in_specs=[
                pl.BlockSpec((1, H, W, C), lambda b: (b, 0, 0, 0)),
                pl.BlockSpec((n_stages, C, C), lambda b: (0, 0, 0)),
            ],
            out_specs=pl.BlockSpec((1, H, W, C), lambda b: (b, 0, 0, 0)),
            scratch_shapes=[
                # merged pool scratch, padded in both H (+4) and W (+WOFF+2)
                pltpu.VMEM((H + 4, WOFF + W + 2, C), x_nhwc.dtype),
            ],
        ),
        compiler_params=pltpu.CompilerParams(**cp_kwargs),
    )(x_nhwc, w)


def crp_reference(x_nhwc, weights, matmul_dtype=None):
    """Pure-JAX reference matching the PyTorch CRPBlock forward (NHWC).

    With matmul_dtype=None the 1x1 conv is done in f32 (exact PyTorch
    semantics); otherwise the conv operands are cast to matmul_dtype with f32
    accumulation, mirroring the kernel's MXU numerics.
    """
    top = x_nhwc
    acc = x_nhwc
    for i in range(weights.shape[0]):
        top = jax.lax.reduce_window(
            top, -jnp.inf, jax.lax.max,
            window_dimensions=(1, 5, 5, 1),
            window_strides=(1, 1, 1, 1),
            padding=[(0, 0), (2, 2), (2, 2), (0, 0)])
        if matmul_dtype is None:
            t = jnp.einsum('bhwc,co->bhwo', top, weights[i])
        else:
            t = jnp.einsum('bhwc,co->bhwo',
                           top.astype(matmul_dtype),
                           weights[i].astype(matmul_dtype),
                           preferred_element_type=jnp.float32)
        top = t.astype(x_nhwc.dtype)
        acc = acc + top
    return acc


if __name__ == "__main__":
    # CRPBlock residual add requires in_planes == out_planes.
    B, C, H, W = 2, 4, 16, 16
    n_stages = 2

    key = jax.random.PRNGKey(0)
    kx, kw = jax.random.split(key)
    # Deterministic synthetic parameters / input (no checkpoint loading).
    x_nchw = jax.random.normal(kx, (B, C, H, W), dtype=jnp.float32)
    weights = 0.1 * jax.random.normal(kw, (n_stages, C, C), dtype=jnp.float32)

    # Transpose PyTorch-style NCHW input to the kernel's NHWC layout.
    x_nhwc = jnp.transpose(x_nchw, (0, 2, 3, 1))

    out = crp_block(x_nhwc, weights)
    jax.block_until_ready(out)

    # 1) Tight check against a reference that mirrors the kernel's bf16-MXU
    #    numerics (validates pooling / residual / indexing logic exactly).
    ref_bf16 = crp_reference(x_nhwc, weights, matmul_dtype=jnp.bfloat16)
    err_bf16 = float(jnp.max(jnp.abs(out - ref_bf16)))
    assert jnp.allclose(out, ref_bf16, atol=1e-3, rtol=1e-3), \
        f"err_vs_bf16_ref={err_bf16}"

    # 2) Loose bf16-level sanity check against exact-f32 PyTorch semantics.
    ref_f32 = crp_reference(x_nhwc, weights)
    err_f32 = float(jnp.max(jnp.abs(out - ref_f32)))
    assert jnp.allclose(out, ref_f32, atol=1e-1, rtol=1e-1), \
        f"err_vs_f32_ref={err_f32}"

    print("KERNEL_OK")
</pallas_src>

<mosaic_0001>
module attributes {stable_mosaic.version = 11 : i64} {
  func.func @_crp_kernel(%arg0: i32, %arg1: memref<1x16x16x4xf32, #tpu.memory_space<vmem>>, %arg2: memref<2x4x4xbf16, #tpu.memory_space<vmem>>, %arg3: memref<1x16x16x4xf32, #tpu.memory_space<vmem>>, %arg4: memref<20x26x4xf32, #tpu.memory_space<vmem>>) attributes {dimension_semantics = [#tpu.dimension_semantics<parallel>], iteration_bounds = array<i64: 2>, scalar_prefetch = 0 : i64, scratch_operands = 1 : i64, tpu.core_type = #tpu.core_type<tc>, window_params = [{transform_indices = @transform_0, window_bounds = array<i64: 1, 16, 16, 4>}, {pipeline_mode = #tpu.pipeline_mode<synchronous>, transform_indices = @transform_1, window_bounds = array<i64: 2, 4, 4>}, {transform_indices = @transform_2, window_bounds = array<i64: 1, 16, 16, 4>}]} {
    %c0 = arith.constant 0 : index
    %c0_0 = arith.constant 0 : index
    %c0_1 = arith.constant 0 : index
    %c0_2 = arith.constant 0 : index
    %0 = vector.load %arg1[%c0, %c0_0, %c0_1, %c0_2] : memref<1x16x16x4xf32, #tpu.memory_space<vmem>>, vector<1x16x16x4xf32>
    %1 = vector.shape_cast %0 : vector<1x16x16x4xf32> to vector<16x16x4xf32>
    %cst = arith.constant 0xFF800000 : f32
    %2 = vector.broadcast %cst : f32 to vector<20x2x4xf32>
    %c0_3 = arith.constant 0 : index
    %c6 = arith.constant 6 : index
    %c0_4 = arith.constant 0 : index
    %3 = vector.load %arg4[%c0_3, %c6, %c0_4] : memref<20x26x4xf32, #tpu.memory_space<vmem>>, vector<20x2x4xf32>
    tpu.vector_store %arg4[%c0_3, %c6, %c0_4], %2 {strides = array<i32>} : memref<20x26x4xf32, #tpu.memory_space<vmem>>, vector<20x2x4xf32>,
    %c0_5 = arith.constant 0 : index
    %c24 = arith.constant 24 : index
    %c0_6 = arith.constant 0 : index
    %4 = vector.load %arg4[%c0_5, %c24, %c0_6] : memref<20x26x4xf32, #tpu.memory_space<vmem>>, vector<20x2x4xf32>
    tpu.vector_store %arg4[%c0_5, %c24, %c0_6], %2 {strides = array<i32>} : memref<20x26x4xf32, #tpu.memory_space<vmem>>, vector<20x2x4xf32>,
    %cst_7 = arith.constant 0xFF800000 : f32
    %5 = vector.broadcast %cst_7 : f32 to vector<2x16x4xf32>
    %c0_8 = arith.constant 0 : index
    %c8 = arith.constant 8 : index
    %c0_9 = arith.constant 0 : index
    %6 = vector.load %arg4[%c0_8, %c8, %c0_9] : memref<20x26x4xf32, #tpu.memory_space<vmem>>, vector<2x16x4xf32>
    tpu.vector_store %arg4[%c0_8, %c8, %c0_9], %5 {strides = array<i32>} : memref<20x26x4xf32, #tpu.memory_space<vmem>>, vector<2x16x4xf32>,
    %c18 = arith.constant 18 : index
    %c8_10 = arith.constant 8 : index
    %c0_11 = arith.constant 0 : index
    %7 = vector.load %arg4[%c18, %c8_10, %c0_11] : memref<20x26x4xf32, #tpu.memory_space<vmem>>, vector<2x16x4xf32>
    tpu.vector_store %arg4[%c18, %c8_10, %c0_11], %5 {strides = array<i32>} : memref<20x26x4xf32, #tpu.memory_space<vmem>>, vector<2x16x4xf32>,
    %c0_12 = arith.constant 0 : index
    %c0_13 = arith.constant 0 : index
    %c0_14 = arith.constant 0 : index
    %c0_15 = arith.constant 0 : index
    %8 = vector.load %arg3[%c0_12, %c0_13, %c0_14, %c0_15] : memref<1x16x16x4xf32, #tpu.memory_space<vmem>>, vector<1x16x16x4xf32>
    %9 = vector.shape_cast %8 : vector<1x16x16x4xf32> to vector<16x16x4xf32>
    %10 = vector.shape_cast %1 : vector<16x16x4xf32> to vector<1x16x16x4xf32>
    tpu.vector_store %arg3[%c0_12, %c0_13, %c0_14, %c0_15], %10 {strides = array<i32>} : memref<1x16x16x4xf32, #tpu.memory_space<vmem>>, vector<1x16x16x4xf32>,
    %c2 = arith.constant 2 : index
    %c8_16 = arith.constant 8 : index
    %c0_17 = arith.constant 0 : index
    %11 = vector.load %arg4[%c2, %c8_16, %c0_17] : memref<20x26x4xf32, #tpu.memory_space<vmem>>, vector<16x16x4xf32>
    tpu.vector_store %arg4[%c2, %c8_16, %c0_17], %1 {strides = array<i32>} : memref<20x26x4xf32, #tpu.memory_space<vmem>>, vector<16x16x4xf32>,
    %c0_18 = arith.constant 0 : index
    %c6_19 = arith.constant 6 : index
    %c0_20 = arith.constant 0 : index
    %12 = vector.load %arg4[%c0_18, %c6_19, %c0_20] : memref<20x26x4xf32, #tpu.memory_space<vmem>>, vector<20x16x4xf32>
    %c0_21 = arith.constant 0 : index
    %c7 = arith.constant 7 : index
    %c0_22 = arith.constant 0 : index
    %13 = vector.load %arg4[%c0_21, %c7, %c0_22] : memref<20x26x4xf32, #tpu.memory_space<vmem>>, vector<20x16x4xf32>
    %14 = arith.maximumf %12, %13 : vector<20x16x4xf32>
    %c0_23 = arith.constant 0 : index
    %c8_24 = arith.constant 8 : index
    %c0_25 = arith.constant 0 : index
    %15 = vector.load %arg4[%c0_23, %c8_24, %c0_25] : memref<20x26x4xf32, #tpu.memory_space<vmem>>, vector<20x16x4xf32>
    %16 = arith.maximumf %14, %15 : vector<20x16x4xf32>
    %c0_26 = arith.constant 0 : index
    %c9 = arith.constant 9 : index
    %c0_27 = arith.constant 0 : index
    %17 = vector.load %arg4[%c0_26, %c9, %c0_27] : memref<20x26x4xf32, #tpu.memory_space<vmem>>, vector<20x16x4xf32>
    %18 = arith.maximumf %16, %17 : vector<20x16x4xf32>
    %c0_28 = arith.constant 0 : index
    %c10 = arith.constant 10 : index
    %c0_29 = arith.constant 0 : index
    %19 = vector.load %arg4[%c0_28, %c10, %c0_29] : memref<20x26x4xf32, #tpu.memory_space<vmem>>, vector<20x16x4xf32>
    %20 = arith.maximumf %18, %19 : vector<20x16x4xf32>
    %21 = vector.extract_strided_slice %20 {offsets = [2, 0, 0], sizes = [16, 16, 4], strides = [1, 1, 1]} : vector<20x16x4xf32> to vector<16x16x4xf32>
    %22 = vector.extract_strided_slice %20 {offsets = [0, 0, 0], sizes = [16, 16, 4], strides = [1, 1, 1]} : vector<20x16x4xf32> to vector<16x16x4xf32>
    %23 = arith.maximumf %21, %22 : vector<16x16x4xf32>
    %24 = vector.extract_strided_slice %20 {offsets = [1, 0, 0], sizes = [16, 16, 4], strides = [1, 1, 1]} : vector<20x16x4xf32> to vector<16x16x4xf32>
    %25 = arith.maximumf %23, %24 : vector<16x16x4xf32>
    %26 = vector.extract_strided_slice %20 {offsets = [3, 0, 0], sizes = [16, 16, 4], strides = [1, 1, 1]} : vector<20x16x4xf32> to vector<16x16x4xf32>
    %27 = arith.maximumf %25, %26 : vector<16x16x4xf32>
    %28 = vector.extract_strided_slice %20 {offsets = [4, 0, 0], sizes = [16, 16, 4], strides = [1, 1, 1]} : vector<20x16x4xf32> to vector<16x16x4xf32>
    %29 = arith.maximumf %27, %28 : vector<16x16x4xf32>
    %30 = vector.shape_cast %29 : vector<16x16x4xf32> to vector<256x4xf32>
    %31 = arith.truncf %30 : vector<256x4xf32> to vector<256x4xbf16>
    %c0_30 = arith.constant 0 : index
    %c0_31 = arith.constant 0 : index
    %c0_32 = arith.constant 0 : index
    %32 = vector.load %arg2[%c0_30, %c0_31, %c0_32] : memref<2x4x4xbf16, #tpu.memory_space<vmem>>, vector<1x4x4xbf16>
    %33 = vector.shape_cast %32 : vector<1x4x4xbf16> to vector<4x4xbf16>
    %cst_33 = arith.constant dense<0.000000e+00> : vector<256x4xf32>
    %34 = tpu.matmul %31, %33, %cst_33 {dimension_numbers = #tpu.dot_dimension_numbers<[1], [0], [0], [1], [0, 0, 1, 1], [], []>} : vector<256x4xbf16>, vector<4x4xbf16>, vector<256x4xf32> -> vector<256x4xf32>
    %35 = vector.shape_cast %34 : vector<256x4xf32> to vector<16x16x4xf32>
    %c0_34 = arith.constant 0 : index
    %c0_35 = arith.constant 0 : index
    %c0_36 = arith.constant 0 : index
    %c0_37 = arith.constant 0 : index
    %36 = vector.load %arg3[%c0_34, %c0_35, %c0_36, %c0_37] : memref<1x16x16x4xf32, #tpu.memory_space<vmem>>, vector<1x16x16x4xf32>
    %37 = vector.shape_cast %36 : vector<1x16x16x4xf32> to vector<16x16x4xf32>
    %38 = arith.addf %37, %35 : vector<16x16x4xf32>
    %c0_38 = arith.constant 0 : index
    %c0_39 = arith.constant 0 : index
    %c0_40 = arith.constant 0 : index
    %c0_41 = arith.constant 0 : index
    %39 = vector.load %arg3[%c0_38, %c0_39, %c0_40, %c0_41] : memref<1x16x16x4xf32, #tpu.memory_space<vmem>>, vector<1x16x16x4xf32>
    %40 = vector.shape_cast %39 : vector<1x16x16x4xf32> to vector<16x16x4xf32>
    %41 = vector.shape_cast %38 : vector<16x16x4xf32> to vector<1x16x16x4xf32>
    tpu.vector_store %arg3[%c0_38, %c0_39, %c0_40, %c0_41], %41 {strides = array<i32>} : memref<1x16x16x4xf32, #tpu.memory_space<vmem>>, vector<1x16x16x4xf32>,
    %c2_42 = arith.constant 2 : index
    %c8_43 = arith.constant 8 : index
    %c0_44 = arith.constant 0 : index
    %42 = vector.load %arg4[%c2_42, %c8_43, %c0_44] : memref<20x26x4xf32, #tpu.memory_space<vmem>>, vector<16x16x4xf32>
    tpu.vector_store %arg4[%c2_42, %c8_43, %c0_44], %35 {strides = array<i32>} : memref<20x26x4xf32, #tpu.memory_space<vmem>>, vector<16x16x4xf32>,
    %c0_45 = arith.constant 0 : index
    %c6_46 = arith.constant 6 : index
    %c0_47 = arith.constant 0 : index
    %43 = vector.load %arg4[%c0_45, %c6_46, %c0_47] : memref<20x26x4xf32, #tpu.memory_space<vmem>>, vector<20x16x4xf32>
    %c0_48 = arith.constant 0 : index
    %c7_49 = arith.constant 7 : index
    %c0_50 = arith.constant 0 : index
    %44 = vector.load %arg4[%c0_48, %c7_49, %c0_50] : memref<20x26x4xf32, #tpu.memory_space<vmem>>, vector<20x16x4xf32>
    %45 = arith.maximumf %43, %44 : vector<20x16x4xf32>
    %c0_51 = arith.constant 0 : index
    %c8_52 = arith.constant 8 : index
    %c0_53 = arith.constant 0 : index
    %46 = vector.load %arg4[%c0_51, %c8_52, %c0_53] : memref<20x26x4xf32, #tpu.memory_space<vmem>>, vector<20x16x4xf32>
    %47 = arith.maximumf %45, %46 : vector<20x16x4xf32>
    %c0_54 = arith.constant 0 : index
    %c9_55 = arith.constant 9 : index
    %c0_56 = arith.constant 0 : index
    %48 = vector.load %arg4[%c0_54, %c9_55, %c0_56] : memref<20x26x4xf32, #tpu.memory_space<vmem>>, vector<20x16x4xf32>
    %49 = arith.maximumf %47, %48 : vector<20x16x4xf32>
    %c0_57 = arith.constant 0 : index
    %c10_58 = arith.constant 10 : index
    %c0_59 = arith.constant 0 : index
    %50 = vector.load %arg4[%c0_57, %c10_58, %c0_59] : memref<20x26x4xf32, #tpu.memory_space<vmem>>, vector<20x16x4xf32>
    %51 = arith.maximumf %49, %50 : vector<20x16x4xf32>
    %52 = vector.extract_strided_slice %51 {offsets = [2, 0, 0], sizes = [16, 16, 4], strides = [1, 1, 1]} : vector<20x16x4xf32> to vector<16x16x4xf32>
    %53 = vector.extract_strided_slice %51 {offsets = [0, 0, 0], sizes = [16, 16, 4], strides = [1, 1, 1]} : vector<20x16x4xf32> to vector<16x16x4xf32>
    %54 = arith.maximumf %52, %53 : vector<16x16x4xf32>
    %55 = vector.extract_strided_slice %51 {offsets = [1, 0, 0], sizes = [16, 16, 4], strides = [1, 1, 1]} : vector<20x16x4xf32> to vector<16x16x4xf32>
    %56 = arith.maximumf %54, %55 : vector<16x16x4xf32>
    %57 = vector.extract_strided_slice %51 {offsets = [3, 0, 0], sizes = [16, 16, 4], strides = [1, 1, 1]} : vector<20x16x4xf32> to vector<16x16x4xf32>
    %58 = arith.maximumf %56, %57 : vector<16x16x4xf32>
    %59 = vector.extract_strided_slice %51 {offsets = [4, 0, 0], sizes = [16, 16, 4], strides = [1, 1, 1]} : vector<20x16x4xf32> to vector<16x16x4xf32>
    %60 = arith.maximumf %58, %59 : vector<16x16x4xf32>
    %61 = vector.shape_cast %60 : vector<16x16x4xf32> to vector<256x4xf32>
    %62 = arith.truncf %61 : vector<256x4xf32> to vector<256x4xbf16>
    %c1 = arith.constant 1 : index
    %c0_60 = arith.constant 0 : index
    %c0_61 = arith.constant 0 : index
    %63 = vector.load %arg2[%c1, %c0_60, %c0_61] : memref<2x4x4xbf16, #tpu.memory_space<vmem>>, vector<1x4x4xbf16>
    %64 = vector.shape_cast %63 : vector<1x4x4xbf16> to vector<4x4xbf16>
    %cst_62 = arith.constant dense<0.000000e+00> : vector<256x4xf32>
    %65 = tpu.matmul %62, %64, %cst_62 {dimension_numbers = #tpu.dot_dimension_numbers<[1], [0], [0], [1], [0, 0, 1, 1], [], []>} : vector<256x4xbf16>, vector<4x4xbf16>, vector<256x4xf32> -> vector<256x4xf32>
    %66 = vector.shape_cast %65 : vector<256x4xf32> to vector<16x16x4xf32>
    %c0_63 = arith.constant 0 : index
    %c0_64 = arith.constant 0 : index
    %c0_65 = arith.constant 0 : index
    %c0_66 = arith.constant 0 : index
    %67 = vector.load %arg3[%c0_63, %c0_64, %c0_65, %c0_66] : memref<1x16x16x4xf32, #tpu.memory_space<vmem>>, vector<1x16x16x4xf32>
    %68 = vector.shape_cast %67 : vector<1x16x16x4xf32> to vector<16x16x4xf32>
    %69 = arith.addf %68, %66 : vector<16x16x4xf32>
    %c0_67 = arith.constant 0 : index
    %c0_68 = arith.constant 0 : index
    %c0_69 = arith.constant 0 : index
    %c0_70 = arith.constant 0 : index
    %70 = vector.load %arg3[%c0_67, %c0_68, %c0_69, %c0_70] : memref<1x16x16x4xf32, #tpu.memory_space<vmem>>, vector<1x16x16x4xf32>
    %71 = vector.shape_cast %70 : vector<1x16x16x4xf32> to vector<16x16x4xf32>
    %72 = vector.shape_cast %69 : vector<16x16x4xf32> to vector<1x16x16x4xf32>
    tpu.vector_store %arg3[%c0_67, %c0_68, %c0_69, %c0_70], %72 {strides = array<i32>} : memref<1x16x16x4xf32, #tpu.memory_space<vmem>>, vector<1x16x16x4xf32>,
    return
  }
  func.func @transform_0(%arg0: i32) -> (i32, i32, i32, i32) {
    %c0_i32 = arith.constant 0 : i32
    %c0_i32_0 = arith.constant 0 : i32
    %c0_i32_1 = arith.constant 0 : i32
    %c0_i32_2 = arith.constant 0 : i32
    return %arg0, %c0_i32, %c0_i32_0, %c0_i32_1 : i32, i32, i32, i32
  }
  func.func @transform_1(%arg0: i32) -> (i32, i32, i32) {
    %c0_i32 = arith.constant 0 : i32
    %c0_i32_0 = arith.constant 0 : i32
    %c0_i32_1 = arith.constant 0 : i32
    %c0_i32_2 = arith.constant 0 : i32
    return %c0_i32, %c0_i32_0, %c0_i32_1 : i32, i32, i32
  }
  func.func @transform_2(%arg0: i32) -> (i32, i32, i32, i32) {
    %c0_i32 = arith.constant 0 : i32
    %c0_i32_0 = arith.constant 0 : i32
    %c0_i32_1 = arith.constant 0 : i32
    %c0_i32_2 = arith.constant 0 : i32
    return %arg0, %c0_i32, %c0_i32_0, %c0_i32_1 : i32, i32, i32, i32
  }
}

</mosaic_0001>

<llo_original>
// kernel: tpu_custom_call.1
$region0: #{tpu_custom_call.1}
  #allocation0 [shape = 'u32[]', space=smem, size = 0x4, offset = 0x4, fixed_abs, tag = 'smem constant byte address 0x4 - core index']
  #allocation1 [shape = 'u32[144,128]{1,0:T(1,128)}', space=vmem, size = 0x12000, scoped, tag = 'internal scratch']
  #allocation2 [shape = 'f32[20,26,4]{2,1,0:T(8,128)}', space=vmem, size = 0x50000, scoped, tag = 'scratch operand']
  %s0 = inlined_call_operand.vmem [shape: f32[2,16,16,4], index: 0, kind: input, shape index: {}]
  %s1 = inlined_call_operand.vmem [shape: bf16[2,4,4], index: 1, kind: input, shape index: {}]
  %s2 = inlined_call_operand.vmem [shape: f32[2,16,16,4], index: 2, kind: output, shape index: {}]
  %s3 = sld [smem:[#allocation0]]
  $region41: #{tpu_custom_call.1} parent=0
    _
  %s5 = ssub.s32 1, %s3
  %s6 = scalar_select 0, %s5, %s3
  loop: start=0, step=1, limit=4
  $region2: #{tpu_custom_call.1} parent=0 // loop_pre_header
    _
  $region3: #{tpu_custom_call.1} parent=0 // loop_header
    %s8 = sphi 0, %s12
    %p9 = scmp.ge.s32.totalorder %s8, 4
    %s18 = sphi 0, %s20
    %s21 = sphi 0, %s18
    %s22 = sphi 0, %s21
    %s38 = sphi 0, %s22
    %s42 = sphi 0, %s42
    %s44 = sphi 0, %s42
    %s45 = sphi 0, %s44
    %s59 = sphi 0, %s45
    %s65 = sphi 0, %s67
    %s68 = sphi 0, %s65
    %s69 = sphi 0, %s68
    %s85 = sphi 0, %s69
  $region4: #{tpu_custom_call.1} parent=0 // loop_header_branch
    %11 = sbr.rel (%p9) target = $region8
  $region5: #{tpu_custom_call.1} parent=0 // loop_body
    %s13 = ssub.s32 %s8, 1
    %s14 = ssub.s32 %s8, 2
    %s15 = sadd.s32 %s8, 1
    %s16 = ssub.s32 %s8, %s15
    %p17 = scmp.eq.s32.totalorder %s16, 0
    %s19 = sadd.s32 %s18, 1
    %s20 = scalar_select %p17, %s18, %s19
    %p23 = pneg %p17
    %p24 = scmp.eq.s32.totalorder %s8, 1
    %p25 = por %p23, %p24
    %p26 = scmp.ne.s32.totalorder %s18, %s21
    %p27 = scmp.eq.s32.totalorder %s8, 0
    %p28 = por %p26, %p27
    %p29 = scmp.ne.s32.totalorder %s18, %s21
    %p30 = scmp.eq.s32.totalorder %s13, 1
    %p31 = por %p29, %p30
    %p32 = scmp.ne.s32.totalorder %s21, %s22
    %p33 = scmp.eq.s32.totalorder %s13, 0
    %p34 = por %p32, %p33
    %p35 = scmp.ne.s32.totalorder %s21, %s22
    %p36 = scmp.eq.s32.totalorder %s14, 1
    %p37 = por %p35, %p36
    %p39 = scmp.ne.s32.totalorder %s22, %s38
    %p40 = scmp.eq.s32.totalorder %s14, 0
    %p41 = por %p39, %p40
    %s43 = sadd.s32 %s42, 1
    %p46 = scmp.eq.s32.totalorder %s8, 1
    %p47 = scmp.ne.s32.totalorder %s42, %s44
    %p48 = scmp.eq.s32.totalorder %s8, 0
    %p49 = por %p47, %p48
    %p50 = scmp.ne.s32.totalorder %s42, %s44
    %p51 = scmp.eq.s32.totalorder %s13, 1
    %p52 = por %p50, %p51
    %p53 = scmp.ne.s32.totalorder %s44, %s45
    %p54 = scmp.eq.s32.totalorder %s13, 0
    %p55 = por %p53, %p54
    %p56 = scmp.ne.s32.totalorder %s44, %s45
    %p57 = scmp.eq.s32.totalorder %s14, 1
    %p58 = por %p56, %p57
    %p60 = scmp.ne.s32.totalorder %s45, %s59
    %p61 = scmp.eq.s32.totalorder %s14, 0
    %p62 = por %p60, %p61
    %s63 = ssub.s32 %s8, %s15
    %p64 = scmp.eq.s32.totalorder %s63, 0
    %s66 = sadd.s32 %s65, 1
    %s67 = scalar_select %p64, %s65, %s66
    %p70 = pneg %p64
    %p71 = scmp.eq.s32.totalorder %s8, 1
    %p72 = por %p70, %p71
    %p73 = scmp.ne.s32.totalorder %s65, %s68
    %p74 = scmp.eq.s32.totalorder %s8, 0
    %p75 = por %p73, %p74
    %p76 = scmp.ne.s32.totalorder %s65, %s68
    %p77 = scmp.eq.s32.totalorder %s13, 1
    %p78 = por %p76, %p77
    %p79 = scmp.ne.s32.totalorder %s68, %s69
    %p80 = scmp.eq.s32.totalorder %s13, 0
    %p81 = por %p79, %p80
    %p82 = scmp.ne.s32.totalorder %s68, %s69
    %p83 = scmp.eq.s32.totalorder %s14, 1
    %p84 = por %p82, %p83
    %p86 = scmp.ne.s32.totalorder %s69, %s85
    %p87 = scmp.eq.s32.totalorder %s14, 0
    %p88 = por %p86, %p87
    %p89 = scmp.le.s32.totalorder 1, %s8
    %p90 = scmp.lt.s32.totalorder %s8, 3
    %p91 = pnand %p89, %p90
    %p92 = pneg %p91
    // Predicated region
    $region9: #{tpu_custom_call.1} parent=5 // pred_check
      _
    $region10: #{tpu_custom_call.1} parent=5 // pred_check_branch
      %94 = sbr.rel (%p91) target = $region12
    $region11: #{tpu_custom_call.1} parent=5 // pred_region
      %s95 = ssub.s32 %s8, 1
      // Predicated region
      $region13: #{tpu_custom_call.1} parent=11 // pred_check
        %p96 = pneg %p55
      $region14: #{tpu_custom_call.1} parent=11 // pred_check_branch
        %98 = sbr.rel (%p96) target = $region16
      $region15: #{tpu_custom_call.1} parent=11 // pred_region
        _
      $region16: #{tpu_custom_call.1} parent=11 // pred_fallthru
        _
    $region12: #{tpu_custom_call.1} parent=5 // pred_fallthru
      _
    %p99 = scmp.lt.s32.totalorder %s8, 2
    // Predicated region
    $region17: #{tpu_custom_call.1} parent=5 // pred_check
      %p100 = pneg %p99
    $region18: #{tpu_custom_call.1} parent=5 // pred_check_branch
      %102 = sbr.rel (%p100) target = $region20
    $region19: #{tpu_custom_call.1} parent=5 // pred_region
      // Predicated region
      $region21: #{tpu_custom_call.1} parent=19 // pred_check
        %p103 = pneg %p28
      $region22: #{tpu_custom_call.1} parent=19 // pred_check_branch
        %105 = sbr.rel (%p103) target = $region24
      $region23: #{tpu_custom_call.1} parent=19 // pred_region
        %p106 = scmp.lt.s32.totalorder %s8, 1
        %s107 = scalar_select %p106, %s8, 1
        %s108 = smul.addr %s107, 32
        %s109 = smul.addr %s108, 8
        %s110 = scalar_lea.vmem %s0, %s109
      $region24: #{tpu_custom_call.1} parent=19 // pred_fallthru
        _
    $region20: #{tpu_custom_call.1} parent=5 // pred_fallthru
      _
    %p111 = scmp.le.s32.totalorder 1, %s8
    %p112 = scmp.lt.s32.totalorder %s8, 3
    %p113 = pnand %p111, %p112
    %p114 = pneg %p113
    // Predicated region
    $region25: #{tpu_custom_call.1} parent=5 // pred_check
      _
    $region26: #{tpu_custom_call.1} parent=5 // pred_check_branch
      %116 = sbr.rel (%p113) target = $region28
    $region27: #{tpu_custom_call.1} parent=5 // pred_region
      %s117 = ssub.s32 %s8, 1
      %p118 = scmp.lt.s32.totalorder %s13, 1
      %s119 = scalar_select %p118, %s13, 1
      %s120 = smul.addr %s119, 32
      %s121 = smul.addr %s120, 8
      %s122 = scalar_lea.vmem %s0, %s121
      %p123 = pneg %p34
      %p124 = pneg %p31
      %p125 = pneg %p55
      %p126 = pneg %p52
      %p127 = pneg %p81
      %p128 = pneg %p78
      %p129 = scmp.lt.s32.totalorder %s13, 1
      %s130 = scalar_select %p129, %s13, 1
      %s131 = smul.addr %s130, 32
      %s132 = smul.addr %s131, 8
      %s133 = scalar_lea.vmem %s2, %s132
      %p134 = scmp.lt.s32.totalorder %s13, 1
      %s135 = scalar_select %p134, %s13, 1
      %s136 = smul.addr %s135, 32
      %s137 = smul.addr %s136, 8
      %s138 = scalar_lea.vmem %s0, %s137
      %p139 = scmp.lt.s32.totalorder %s13, 1
      %s140 = scalar_select %p139, %s13, 1
      %s141 = smul.addr %s140, 32
      %s142 = smul.addr %s141, 8
      %s143 = scalar_lea.vmem %s2, %s142
      %v145 = vld [vmem:[%s138] sm:$0xff]
      %v146 = vld [vmem:[%s138 + $0x8] sm:$0xff]
      %v147 = vld [vmem:[%s138 + $0x10] sm:$0xff]
      %v148 = vld [vmem:[%s138 + $0x18] sm:$0xff]
      %v149 = vld [vmem:[%s138 + $0x20] sm:$0xff]
      %v150 = vld [vmem:[%s138 + $0x28] sm:$0xff]
      %v151 = vld [vmem:[%s138 + $0x30] sm:$0xff]
      %v152 = vld [vmem:[%s138 + $0x38] sm:$0xff]
      %v153 = vld [vmem:[%s138 + $0x40] sm:$0xff]
      %v154 = vld [vmem:[%s138 + $0x48] sm:$0xff]
      %v155 = vld [vmem:[%s138 + $0x50] sm:$0xff]
      %v156 = vld [vmem:[%s138 + $0x58] sm:$0xff]
      %v157 = vld [vmem:[%s138 + $0x60] sm:$0xff]
      %v158 = vld [vmem:[%s138 + $0x68] sm:$0xff]
      %v159 = vld [vmem:[%s138 + $0x70] sm:$0xff]
      %v160 = vld [vmem:[%s138 + $0x78] sm:$0xff]
      %v161 = vld [vmem:[%s138 + $0x80] sm:$0xff]
      %v162 = vld [vmem:[%s138 + $0x88] sm:$0xff]
      %v163 = vld [vmem:[%s138 + $0x90] sm:$0xff]
      %v164 = vld [vmem:[%s138 + $0x98] sm:$0xff]
      %v165 = vld [vmem:[%s138 + $0xa0] sm:$0xff]
      %v166 = vld [vmem:[%s138 + $0xa8] sm:$0xff]
      %v167 = vld [vmem:[%s138 + $0xb0] sm:$0xff]
      %v168 = vld [vmem:[%s138 + $0xb8] sm:$0xff]
      %v169 = vld [vmem:[%s138 + $0xc0] sm:$0xff]
      %v170 = vld [vmem:[%s138 + $0xc8] sm:$0xff]
      %v171 = vld [vmem:[%s138 + $0xd0] sm:$0xff]
      %v172 = vld [vmem:[%s138 + $0xd8] sm:$0xff]
      %v173 = vld [vmem:[%s138 + $0xe0] sm:$0xff]
      %v174 = vld [vmem:[%s138 + $0xe8] sm:$0xff]
      %v175 = vld [vmem:[%s138 + $0xf0] sm:$0xff]
      %v176 = vld [vmem:[%s138 + $0xf8] sm:$0xff]
      %vm177 = vcmask 25600
      %178 = vst.msk [vmem:[#allocation2 + $0x6] sm:$0x3] %vm177, -inf
      %179 = vst.msk [vmem:[#allocation2 + $0x26] sm:$0x3] %vm177, -inf
      %180 = vst.msk [vmem:[#allocation2 + $0x46] sm:$0x3] %vm177, -inf
      %181 = vst.msk [vmem:[#allocation2 + $0x66] sm:$0x3] %vm177, -inf
      %182 = vst.msk [vmem:[#allocation2 + $0x86] sm:$0x3] %vm177, -inf
      %183 = vst.msk [vmem:[#allocation2 + $0xa6] sm:$0x3] %vm177, -inf
      %184 = vst.msk [vmem:[#allocation2 + $0xc6] sm:$0x3] %vm177, -inf
      %185 = vst.msk [vmem:[#allocation2 + $0xe6] sm:$0x3] %vm177, -inf
      %186 = vst.msk [vmem:[#allocation2 + $0x106] sm:$0x3] %vm177, -inf
      %187 = vst.msk [vmem:[#allocation2 + $0x126] sm:$0x3] %vm177, -inf
      %188 = vst.msk [vmem:[#allocation2 + $0x146] sm:$0x3] %vm177, -inf
      %189 = vst.msk [vmem:[#allocation2 + $0x166] sm:$0x3] %vm177, -inf
      %190 = vst.msk [vmem:[#allocation2 + $0x186] sm:$0x3] %vm177, -inf
      %191 = vst.msk [vmem:[#allocation2 + $0x1a6] sm:$0x3] %vm177, -inf
      %192 = vst.msk [vmem:[#allocation2 + $0x1c6] sm:$0x3] %vm177, -inf
      %193 = vst.msk [vmem:[#allocation2 + $0x1e6] sm:$0x3] %vm177, -inf
      %194 = vst.msk [vmem:[#allocation2 + $0x206] sm:$0x3] %vm177, -inf
      %195 = vst.msk [vmem:[#allocation2 + $0x226] sm:$0x3] %vm177, -inf
      %196 = vst.msk [vmem:[#allocation2 + $0x246] sm:$0x3] %vm177, -inf
      %197 = vst.msk [vmem:[#allocation2 + $0x266] sm:$0x3] %vm177, -inf
      %198 = vst.msk [vmem:[#allocation2 + $0x18] sm:$0x3] %vm177, -inf
      %199 = vst.msk [vmem:[#allocation2 + $0x38] sm:$0x3] %vm177, -inf
      %200 = vst.msk [vmem:[#allocation2 + $0x58] sm:$0x3] %vm177, -inf
      %201 = vst.msk [vmem:[#allocation2 + $0x78] sm:$0x3] %vm177, -inf
      %202 = vst.msk [vmem:[#allocation2 + $0x98] sm:$0x3] %vm177, -inf
      %203 = vst.msk [vmem:[#allocation2 + $0xb8] sm:$0x3] %vm177, -inf
      %204 = vst.msk [vmem:[#allocation2 + $0xd8] sm:$0x3] %vm177, -inf
      %205 = vst.msk [vmem:[#allocation2 + $0xf8] sm:$0x3] %vm177, -inf
      %206 = vst.msk [vmem:[#allocation2 + $0x118] sm:$0x3] %vm177, -inf
      %207 = vst.msk [vmem:[#allocation2 + $0x138] sm:$0x3] %vm177, -inf
      %208 = vst.msk [vmem:[#allocation2 + $0x158] sm:$0x3] %vm177, -inf
      %209 = vst.msk [vmem:[#allocation2 + $0x178] sm:$0x3] %vm177, -inf
      %210 = vst.msk [vmem:[#allocation2 + $0x198] sm:$0x3] %vm177, -inf
      %211 = vst.msk [vmem:[#allocation2 + $0x1b8] sm:$0x3] %vm177, -inf
      %212 = vst.msk [vmem:[#allocation2 + $0x1d8] sm:$0x3] %vm177, -inf
      %213 = vst.msk [vmem:[#allocation2 + $0x1f8] sm:$0x3] %vm177, -inf
      %214 = vst.msk [vmem:[#allocation2 + $0x218] sm:$0x3] %vm177, -inf
      %215 = vst.msk [vmem:[#allocation2 + $0x238] sm:$0x3] %vm177, -inf
      %216 = vst.msk [vmem:[#allocation2 + $0x258] sm:$0x3] %vm177, -inf
      %217 = vst.msk [vmem:[#allocation2 + $0x278] sm:$0x3] %vm177, -inf
      %vm218 = vcmask 31744
      %219 = vst.msk [vmem:[#allocation2 + $0x8] sm:$0xff] %vm218, -inf
      %220 = vst.msk [vmem:[#allocation2 + $0x10] sm:$0xff] %vm218, -inf
      %221 = vst.msk [vmem:[#allocation2 + $0x28] sm:$0xff] %vm218, -inf
      %222 = vst.msk [vmem:[#allocation2 + $0x30] sm:$0xff] %vm218, -inf
      %s223 = scalar_lea.vmem [#allocation2], 576
      %224 = vst.msk [vmem:[%s223 + $0x8] sm:$0xff] %vm218, -inf
      %225 = vst.msk [vmem:[%s223 + $0x10] sm:$0xff] %vm218, -inf
      %226 = vst.msk [vmem:[%s223 + $0x28] sm:$0xff] %vm218, -inf
      %227 = vst.msk [vmem:[%s223 + $0x30] sm:$0xff] %vm218, -inf
      %228 = vst.msk [vmem:[%s143] sm:$0xff] %vm218, %v145
      %229 = vst.msk [vmem:[%s143 + $0x8] sm:$0xff] %vm218, %v146
      %230 = vst.msk [vmem:[%s143 + $0x10] sm:$0xff] %vm218, %v147
      %231 = vst.msk [vmem:[%s143 + $0x18] sm:$0xff] %vm218, %v148
      %232 = vst.msk [vmem:[%s143 + $0x20] sm:$0xff] %vm218, %v149
      %233 = vst.msk [vmem:[%s143 + $0x28] sm:$0xff] %vm218, %v150
      %234 = vst.msk [vmem:[%s143 + $0x30] sm:$0xff] %vm218, %v151
      %235 = vst.msk [vmem:[%s143 + $0x38] sm:$0xff] %vm218, %v152
      %236 = vst.msk [vmem:[%s143 + $0x40] sm:$0xff] %vm218, %v153
      %237 = vst.msk [vmem:[%s143 + $0x48] sm:$0xff] %vm218, %v154
      %238 = vst.msk [vmem:[%s143 + $0x50] sm:$0xff] %vm218, %v155
      %239 = vst.msk [vmem:[%s143 + $0x58] sm:$0xff] %vm218, %v156
      %240 = vst.msk [vmem:[%s143 + $0x60] sm:$0xff] %vm218, %v157
      %241 = vst.msk [vmem:[%s143 + $0x68] sm:$0xff] %vm218, %v158
      %242 = vst.msk [vmem:[%s143 + $0x70] sm:$0xff] %vm218, %v159
      %243 = vst.msk [vmem:[%s143 + $0x78] sm:$0xff] %vm218, %v160
      %244 = vst.msk [vmem:[%s143 + $0x80] sm:$0xff] %vm218, %v161
      %245 = vst.msk [vmem:[%s143 + $0x88] sm:$0xff] %vm218, %v162
      %246 = vst.msk [vmem:[%s143 + $0x90] sm:$0xff] %vm218, %v163
      %247 = vst.msk [vmem:[%s143 + $0x98] sm:$0xff] %vm218, %v164
      %248 = vst.msk [vmem:[%s143 + $0xa0] sm:$0xff] %vm218, %v165
      %249 = vst.msk [vmem:[%s143 + $0xa8] sm:$0xff] %vm218, %v166
      %250 = vst.msk [vmem:[%s143 + $0xb0] sm:$0xff] %vm218, %v167
      %251 = vst.msk [vmem:[%s143 + $0xb8] sm:$0xff] %vm218, %v168
      %252 = vst.msk [vmem:[%s143 + $0xc0] sm:$0xff] %vm218, %v169
      %253 = vst.msk [vmem:[%s143 + $0xc8] sm:$0xff] %vm218, %v170
      %254 = vst.msk [vmem:[%s143 + $0xd0] sm:$0xff] %vm218, %v171
      %255 = vst.msk [vmem:[%s143 + $0xd8] sm:$0xff] %vm218, %v172
      %256 = vst.msk [vmem:[%s143 + $0xe0] sm:$0xff] %vm218, %v173
      %257 = vst.msk [vmem:[%s143 + $0xe8] sm:$0xff] %vm218, %v174
      %258 = vst.msk [vmem:[%s143 + $0xf0] sm:$0xff] %vm218, %v175
      %259 = vst.msk [vmem:[%s143 + $0xf8] sm:$0xff] %vm218, %v176
      %s260 = scalar_lea.vmem [#allocation2], 64
      %261 = vst.msk [vmem:[%s260 + $0x8] sm:$0xff] %vm218, %v145
      %262 = vst.msk [vmem:[%s260 + $0x10] sm:$0xff] %vm218, %v146
      %263 = vst.msk [vmem:[%s260 + $0x28] sm:$0xff] %vm218, %v147
      %264 = vst.msk [vmem:[%s260 + $0x30] sm:$0xff] %vm218, %v148
      %265 = vst.msk [vmem:[%s260 + $0x48] sm:$0xff] %vm218, %v149
      %266 = vst.msk [vmem:[%s260 + $0x50] sm:$0xff] %vm218, %v150
      %267 = vst.msk [vmem:[%s260 + $0x68] sm:$0xff] %vm218, %v151
      %268 = vst.msk [vmem:[%s260 + $0x70] sm:$0xff] %vm218, %v152
      %269 = vst.msk [vmem:[%s260 + $0x88] sm:$0xff] %vm218, %v153
      %270 = vst.msk [vmem:[%s260 + $0x90] sm:$0xff] %vm218, %v154
      %271 = vst.msk [vmem:[%s260 + $0xa8] sm:$0xff] %vm218, %v155
      %272 = vst.msk [vmem:[%s260 + $0xb0] sm:$0xff] %vm218, %v156
      %273 = vst.msk [vmem:[%s260 + $0xc8] sm:$0xff] %vm218, %v157
      %274 = vst.msk [vmem:[%s260 + $0xd0] sm:$0xff] %vm218, %v158
      %275 = vst.msk [vmem:[%s260 + $0xe8] sm:$0xff] %vm218, %v159
      %276 = vst.msk [vmem:[%s260 + $0xf0] sm:$0xff] %vm218, %v160
      %277 = vst.msk [vmem:[%s260 + $0x108] sm:$0xff] %vm218, %v161
      %278 = vst.msk [vmem:[%s260 + $0x110] sm:$0xff] %vm218, %v162
      %279 = vst.msk [vmem:[%s260 + $0x128] sm:$0xff] %vm218, %v163
      %280 = vst.msk [vmem:[%s260 + $0x130] sm:$0xff] %vm218, %v164
      %281 = vst.msk [vmem:[%s260 + $0x148] sm:$0xff] %vm218, %v165
      %282 = vst.msk [vmem:[%s260 + $0x150] sm:$0xff] %vm218, %v166
      %283 = vst.msk [vmem:[%s260 + $0x168] sm:$0xff] %vm218, %v167
      %284 = vst.msk [vmem:[%s260 + $0x170] sm:$0xff] %vm218, %v168
      %285 = vst.msk [vmem:[%s260 + $0x188] sm:$0xff] %vm218, %v169
      %286 = vst.msk [vmem:[%s260 + $0x190] sm:$0xff] %vm218, %v170
      %287 = vst.msk [vmem:[%s260 + $0x1a8] sm:$0xff] %vm218, %v171
      %288 = vst.msk [vmem:[%s260 + $0x1b0] sm:$0xff] %vm218, %v172
      %289 = vst.msk [vmem:[%s260 + $0x1c8] sm:$0xff] %vm218, %v173
      %290 = vst.msk [vmem:[%s260 + $0x1d0] sm:$0xff] %vm218, %v174
      %291 = vst.msk [vmem:[%s260 + $0x1e8] sm:$0xff] %vm218, %v175
      %292 = vst.msk [vmem:[%s260 + $0x1f0] sm:$0xff] %vm218, %v176
      %v293 = vld [vmem:[#allocation2 + $0x6] sm:$0xff]
      %v294 = vld [vmem:[#allocation2 + $0xe] sm:$0xff]
      %v295 = vld [vmem:[#allocation2 + $0x26] sm:$0xff]
      %v296 = vld [vmem:[#allocation2 + $0x2e] sm:$0xff]
      %v297 = vld [vmem:[#allocation2 + $0x46] sm:$0xff]
      %v298 = vld [vmem:[#allocation2 + $0x4e] sm:$0xff]
      %v299 = vld [vmem:[#allocation2 + $0x66] sm:$0xff]
      %v300 = vld [vmem:[#allocation2 + $0x6e] sm:$0xff]
      %v301 = vld [vmem:[#allocation2 + $0x86] sm:$0xff]
      %v302 = vld [vmem:[#allocation2 + $0x8e] sm:$0xff]
      %v303 = vld [vmem:[#allocation2 + $0xa6] sm:$0xff]
      %v304 = vld [vmem:[#allocation2 + $0xae] sm:$0xff]
      %v305 = vld [vmem:[#allocation2 + $0xc6] sm:$0xff]
      %v306 = vld [vmem:[#allocation2 + $0xce] sm:$0xff]
      %v307 = vld [vmem:[#allocation2 + $0xe6] sm:$0xff]
      %v308 = vld [vmem:[#allocation2 + $0xee] sm:$0xff]
      %v309 = vld [vmem:[#allocation2 + $0x106] sm:$0xff]
      %v310 = vld [vmem:[#allocation2 + $0x10e] sm:$0xff]
      %v311 = vld [vmem:[#allocation2 + $0x126] sm:$0xff]
      %v312 = vld [vmem:[#allocation2 + $0x12e] sm:$0xff]
      %v313 = vld [vmem:[#allocation2 + $0x146] sm:$0xff]
      %v314 = vld [vmem:[#allocation2 + $0x14e] sm:$0xff]
      %v315 = vld [vmem:[#allocation2 + $0x166] sm:$0xff]
      %v316 = vld [vmem:[#allocation2 + $0x16e] sm:$0xff]
      %v317 = vld [vmem:[#allocation2 + $0x186] sm:$0xff]
      %v318 = vld [vmem:[#allocation2 + $0x18e] sm:$0xff]
      %v319 = vld [vmem:[#allocation2 + $0x1a6] sm:$0xff]
      %v320 = vld [vmem:[#allocation2 + $0x1ae] sm:$0xff]
      %v321 = vld [vmem:[#allocation2 + $0x1c6] sm:$0xff]
      %v322 = vld [vmem:[#allocation2 + $0x1ce] sm:$0xff]
      %v323 = vld [vmem:[#allocation2 + $0x1e6] sm:$0xff]
      %v324 = vld [vmem:[#allocation2 + $0x1ee] sm:$0xff]
      %v325 = vld [vmem:[#allocation2 + $0x206] sm:$0xff]
      %v326 = vld [vmem:[#allocation2 + $0x20e] sm:$0xff]
      %v327 = vld [vmem:[#allocation2 + $0x226] sm:$0xff]
      %v328 = vld [vmem:[#allocation2 + $0x22e] sm:$0xff]
      %v329 = vld [vmem:[#allocation2 + $0x246] sm:$0xff]
      %v330 = vld [vmem:[#allocation2 + $0x24e] sm:$0xff]
      %v331 = vld [vmem:[#allocation2 + $0x266] sm:$0xff]
      %v332 = vld [vmem:[#allocation2 + $0x26e] sm:$0xff]
      %v333 = vld [vmem:[#allocation2 + $0x7] sm:$0xff]
      %v334 = vld [vmem:[#allocation2 + $0xf] sm:$0xff]
      %v335 = vld [vmem:[#allocation2 + $0x27] sm:$0xff]
      %v336 = vld [vmem:[#allocation2 + $0x2f] sm:$0xff]
      %v337 = vld [vmem:[#allocation2 + $0x47] sm:$0xff]
      %v338 = vld [vmem:[#allocation2 + $0x4f] sm:$0xff]
      %v339 = vld [vmem:[#allocation2 + $0x67] sm:$0xff]
      %v340 = vld [vmem:[#allocation2 + $0x6f] sm:$0xff]
      %v341 = vld [vmem:[#allocation2 + $0x87] sm:$0xff]
      %v342 = vld [vmem:[#allocation2 + $0x8f] sm:$0xff]
      %v343 = vld [vmem:[#allocation2 + $0xa7] sm:$0xff]
      %v344 = vld [vmem:[#allocation2 + $0xaf] sm:$0xff]
      %v345 = vld [vmem:[#allocation2 + $0xc7] sm:$0xff]
      %v346 = vld [vmem:[#allocation2 + $0xcf] sm:$0xff]
      %v347 = vld [vmem:[#allocation2 + $0xe7] sm:$0xff]
      %v348 = vld [vmem:[#allocation2 + $0xef] sm:$0xff]
      %v349 = vld [vmem:[#allocation2 + $0x107] sm:$0xff]
      %v350 = vld [vmem:[#allocation2 + $0x10f] sm:$0xff]
      %v351 = vld [vmem:[#allocation2 + $0x127] sm:$0xff]
      %v352 = vld [vmem:[#allocation2 + $0x12f] sm:$0xff]
      %v353 = vld [vmem:[#allocation2 + $0x147] sm:$0xff]
      %v354 = vld [vmem:[#allocation2 + $0x14f] sm:$0xff]
      %v355 = vld [vmem:[#allocation2 + $0x167] sm:$0xff]
      %v356 = vld [vmem:[#allocation2 + $0x16f] sm:$0xff]
      %v357 = vld [vmem:[#allocation2 + $0x187] sm:$0xff]
      %v358 = vld [vmem:[#allocation2 + $0x18f] sm:$0xff]
      %v359 = vld [vmem:[#allocation2 + $0x1a7] sm:$0xff]
      %v360 = vld [vmem:[#allocation2 + $0x1af] sm:$0xff]
      %v361 = vld [vmem:[#allocation2 + $0x1c7] sm:$0xff]
      %v362 = vld [vmem:[#allocation2 + $0x1cf] sm:$0xff]
      %v363 = vld [vmem:[#allocation2 + $0x1e7] sm:$0xff]
      %v364 = vld [vmem:[#allocation2 + $0x1ef] sm:$0xff]
      %v365 = vld [vmem:[#allocation2 + $0x207] sm:$0xff]
      %v366 = vld [vmem:[#allocation2 + $0x20f] sm:$0xff]
      %v367 = vld [vmem:[#allocation2 + $0x227] sm:$0xff]
      %v368 = vld [vmem:[#allocation2 + $0x22f] sm:$0xff]
      %v369 = vld [vmem:[#allocation2 + $0x247] sm:$0xff]
      %v370 = vld [vmem:[#allocation2 + $0x24f] sm:$0xff]
      %v371 = vld [vmem:[#allocation2 + $0x267] sm:$0xff]
      %v372 = vld [vmem:[#allocation2 + $0x26f] sm:$0xff]
      %v373 = vmax.f32 %v293, %v333
      %v374 = vmax.f32 %v294, %v334
      %v375 = vmax.f32 %v295, %v335
      %v376 = vmax.f32 %v296, %v336
      %v377 = vmax.f32 %v297, %v337
      %v378 = vmax.f32 %v298, %v338
      %v379 = vmax.f32 %v299, %v339
      %v380 = vmax.f32 %v300, %v340
      %v381 = vmax.f32 %v301, %v341
      %v382 = vmax.f32 %v302, %v342
      %v383 = vmax.f32 %v303, %v343
      %v384 = vmax.f32 %v304, %v344
      %v385 = vmax.f32 %v305, %v345
      %v386 = vmax.f32 %v306, %v346
      %v387 = vmax.f32 %v307, %v347
      %v388 = vmax.f32 %v308, %v348
      %v389 = vmax.f32 %v309, %v349
      %v390 = vmax.f32 %v310, %v350
      %v391 = vmax.f32 %v311, %v351
      %v392 = vmax.f32 %v312, %v352
      %v393 = vmax.f32 %v313, %v353
      %v394 = vmax.f32 %v314, %v354
      %v395 = vmax.f32 %v315, %v355
      %v396 = vmax.f32 %v316, %v356
      %v397 = vmax.f32 %v317, %v357
      %v398 = vmax.f32 %v318, %v358
      %v399 = vmax.f32 %v319, %v359
      %v400 = vmax.f32 %v320, %v360
      %v401 = vmax.f32 %v321, %v361
      %v402 = vmax.f32 %v322, %v362
      %v403 = vmax.f32 %v323, %v363
      %v404 = vmax.f32 %v324, %v364
      %v405 = vmax.f32 %v325, %v365
      %v406 = vmax.f32 %v326, %v366
      %v407 = vmax.f32 %v327, %v367
      %v408 = vmax.f32 %v328, %v368
      %v409 = vmax.f32 %v329, %v369
      %v410 = vmax.f32 %v330, %v370
      %v411 = vmax.f32 %v331, %v371
      %v412 = vmax.f32 %v332, %v372
      %v413 = vld [vmem:[#allocation2 + $0x8] sm:$0xff]
      %v414 = vld [vmem:[#allocation2 + $0x10] sm:$0xff]
      %v415 = vld [vmem:[#allocation2 + $0x28] sm:$0xff]
      %v416 = vld [vmem:[#allocation2 + $0x30] sm:$0xff]
      %v417 = vld [vmem:[#allocation2 + $0x48] sm:$0xff]
      %v418 = vld [vmem:[#allocation2 + $0x50] sm:$0xff]
      %v419 = vld [vmem:[#allocation2 + $0x68] sm:$0xff]
      %v420 = vld [vmem:[#allocation2 + $0x70] sm:$0xff]
      %v421 = vld [vmem:[#allocation2 + $0x88] sm:$0xff]
      %v422 = vld [vmem:[#allocation2 + $0x90] sm:$0xff]
      %v423 = vld [vmem:[#allocation2 + $0xa8] sm:$0xff]
      %v424 = vld [vmem:[#allocation2 + $0xb0] sm:$0xff]
      %v425 = vld [vmem:[#allocation2 + $0xc8] sm:$0xff]
      %v426 = vld [vmem:[#allocation2 + $0xd0] sm:$0xff]
      %v427 = vld [vmem:[#allocation2 + $0xe8] sm:$0xff]
      %v428 = vld [vmem:[#allocation2 + $0xf0] sm:$0xff]
      %v429 = vld [vmem:[#allocation2 + $0x108] sm:$0xff]
      %v430 = vld [vmem:[#allocation2 + $0x110] sm:$0xff]
      %v431 = vld [vmem:[#allocation2 + $0x128] sm:$0xff]
      %v432 = vld [vmem:[#allocation2 + $0x130] sm:$0xff]
      %v433 = vld [vmem:[#allocation2 + $0x148] sm:$0xff]
      %v434 = vld [vmem:[#allocation2 + $0x150] sm:$0xff]
      %v435 = vld [vmem:[#allocation2 + $0x168] sm:$0xff]
      %v436 = vld [vmem:[#allocation2 + $0x170] sm:$0xff]
      %v437 = vld [vmem:[#allocation2 + $0x188] sm:$0xff]
      %v438 = vld [vmem:[#allocation2 + $0x190] sm:$0xff]
      %v439 = vld [vmem:[#allocation2 + $0x1a8] sm:$0xff]
      %v440 = vld [vmem:[#allocation2 + $0x1b0] sm:$0xff]
      %v441 = vld [vmem:[#allocation2 + $0x1c8] sm:$0xff]
      %v442 = vld [vmem:[#allocation2 + $0x1d0] sm:$0xff]
      %v443 = vld [vmem:[#allocation2 + $0x1e8] sm:$0xff]
      %v444 = vld [vmem:[#allocation2 + $0x1f0] sm:$0xff]
      %v445 = vld [vmem:[#allocation2 + $0x208] sm:$0xff]
      %v446 = vld [vmem:[#allocation2 + $0x210] sm:$0xff]
      %v447 = vld [vmem:[#allocation2 + $0x228] sm:$0xff]
      %v448 = vld [vmem:[#allocation2 + $0x230] sm:$0xff]
      %v449 = vld [vmem:[#allocation2 + $0x248] sm:$0xff]
      %v450 = vld [vmem:[#allocation2 + $0x250] sm:$0xff]
      %v451 = vld [vmem:[#allocation2 + $0x268] sm:$0xff]
      %v452 = vld [vmem:[#allocation2 + $0x270] sm:$0xff]
      %v453 = vmax.f32 %v373, %v413
      %v454 = vmax.f32 %v374, %v414
      %v455 = vmax.f32 %v375, %v415
      %v456 = vmax.f32 %v376, %v416
      %v457 = vmax.f32 %v377, %v417
      %v458 = vmax.f32 %v378, %v418
      %v459 = vmax.f32 %v379, %v419
      %v460 = vmax.f32 %v380, %v420
      %v461 = vmax.f32 %v381, %v421
      %v462 = vmax.f32 %v382, %v422
      %v463 = vmax.f32 %v383, %v423
      %v464 = vmax.f32 %v384, %v424
      %v465 = vmax.f32 %v385, %v425
      %v466 = vmax.f32 %v386, %v426
      %v467 = vmax.f32 %v387, %v427
      %v468 = vmax.f32 %v388, %v428
      %v469 = vmax.f32 %v389, %v429
      %v470 = vmax.f32 %v390, %v430
      %v471 = vmax.f32 %v391, %v431
      %v472 = vmax.f32 %v392, %v432
      %v473 = vmax.f32 %v393, %v433
      %v474 = vmax.f32 %v394, %v434
      %v475 = vmax.f32 %v395, %v435
      %v476 = vmax.f32 %v396, %v436
      %v477 = vmax.f32 %v397, %v437
      %v478 = vmax.f32 %v398, %v438
      %v479 = vmax.f32 %v399, %v439
      %v480 = vmax.f32 %v400, %v440
      %v481 = vmax.f32 %v401, %v441
      %v482 = vmax.f32 %v402, %v442
      %v483 = vmax.f32 %v403, %v443
      %v484 = vmax.f32 %v404, %v444
      %v485 = vmax.f32 %v405, %v445
      %v486 = vmax.f32 %v406, %v446
      %v487 = vmax.f32 %v407, %v447
      %v488 = vmax.f32 %v408, %v448
      %v489 = vmax.f32 %v409, %v449
      %v490 = vmax.f32 %v410, %v450
      %v491 = vmax.f32 %v411, %v451
      %v492 = vmax.f32 %v412, %v452
      %v493 = vld [vmem:[#allocation2 + $0x9] sm:$0xff]
      %v494 = vld [vmem:[#allocation2 + $0x11] sm:$0xff]
      %v495 = vld [vmem:[#allocation2 + $0x29] sm:$0xff]
      %v496 = vld [vmem:[#allocation2 + $0x31] sm:$0xff]
      %v497 = vld [vmem:[#allocation2 + $0x49] sm:$0xff]
      %v498 = vld [vmem:[#allocation2 + $0x51] sm:$0xff]
      %v499 = vld [vmem:[#allocation2 + $0x69] sm:$0xff]
      %v500 = vld [vmem:[#allocation2 + $0x71] sm:$0xff]
      %v501 = vld [vmem:[#allocation2 + $0x89] sm:$0xff]
      %v502 = vld [vmem:[#allocation2 + $0x91] sm:$0xff]
      %v503 = vld [vmem:[#allocation2 + $0xa9] sm:$0xff]
      %v504 = vld [vmem:[#allocation2 + $0xb1] sm:$0xff]
      %v505 = vld [vmem:[#allocation2 + $0xc9] sm:$0xff]
      %v506 = vld [vmem:[#allocation2 + $0xd1] sm:$0xff]
      %v507 = vld [vmem:[#allocation2 + $0xe9] sm:$0xff]
      %v508 = vld [vmem:[#allocation2 + $0xf1] sm:$0xff]
      %v509 = vld [vmem:[#allocation2 + $0x109] sm:$0xff]
      %v510 = vld [vmem:[#allocation2 + $0x111] sm:$0xff]
      %v511 = vld [vmem:[#allocation2 + $0x129] sm:$0xff]
      %v512 = vld [vmem:[#allocation2 + $0x131] sm:$0xff]
      %v513 = vld [vmem:[#allocation2 + $0x149] sm:$0xff]
      %v514 = vld [vmem:[#allocation2 + $0x151] sm:$0xff]
      %v515 = vld [vmem:[#allocation2 + $0x169] sm:$0xff]
      %v516 = vld [vmem:[#allocation2 + $0x171] sm:$0xff]
      %v517 = vld [vmem:[#allocation2 + $0x189] sm:$0xff]
      %v518 = vld [vmem:[#allocation2 + $0x191] sm:$0xff]
      %v519 = vld [vmem:[#allocation2 + $0x1a9] sm:$0xff]
      %v520 = vld [vmem:[#allocation2 + $0x1b1] sm:$0xff]
      %v521 = vld [vmem:[#allocation2 + $0x1c9] sm:$0xff]
      %v522 = vld [vmem:[#allocation2 + $0x1d1] sm:$0xff]
      %v523 = vld [vmem:[#allocation2 + $0x1e9] sm:$0xff]
      %v524 = vld [vmem:[#allocation2 + $0x1f1] sm:$0xff]
      %v525 = vld [vmem:[#allocation2 + $0x209] sm:$0xff]
      %v526 = vld [vmem:[#allocation2 + $0x211] sm:$0xff]
      %v527 = vld [vmem:[#allocation2 + $0x229] sm:$0xff]
      %v528 = vld [vmem:[#allocation2 + $0x231] sm:$0xff]
      %v529 = vld [vmem:[#allocation2 + $0x249] sm:$0xff]
      %v530 = vld [vmem:[#allocation2 + $0x251] sm:$0xff]
      %v531 = vld [vmem:[#allocation2 + $0x269] sm:$0xff]
      %v532 = vld [vmem:[#allocation2 + $0x271] sm:$0xff]
      %v533 = vmax.f32 %v453, %v493
      %v534 = vmax.f32 %v454, %v494
      %v535 = vmax.f32 %v455, %v495
      %v536 = vmax.f32 %v456, %v496
      %v537 = vmax.f32 %v457, %v497
      %v538 = vmax.f32 %v458, %v498
      %v539 = vmax.f32 %v459, %v499
      %v540 = vmax.f32 %v460, %v500
      %v541 = vmax.f32 %v461, %v501
      %v542 = vmax.f32 %v462, %v502
      %v543 = vmax.f32 %v463, %v503
      %v544 = vmax.f32 %v464, %v504
      %v545 = vmax.f32 %v465, %v505
      %v546 = vmax.f32 %v466, %v506
      %v547 = vmax.f32 %v467, %v507
      %v548 = vmax.f32 %v468, %v508
      %v549 = vmax.f32 %v469, %v509
      %v550 = vmax.f32 %v470, %v510
      %v551 = vmax.f32 %v471, %v511
      %v552 = vmax.f32 %v472, %v512
      %v553 = vmax.f32 %v473, %v513
      %v554 = vmax.f32 %v474, %v514
      %v555 = vmax.f32 %v475, %v515
      %v556 = vmax.f32 %v476, %v516
      %v557 = vmax.f32 %v477, %v517
      %v558 = vmax.f32 %v478, %v518
      %v559 = vmax.f32 %v479, %v519
      %v560 = vmax.f32 %v480, %v520
      %v561 = vmax.f32 %v481, %v521
      %v562 = vmax.f32 %v482, %v522
      %v563 = vmax.f32 %v483, %v523
      %v564 = vmax.f32 %v484, %v524
      %v565 = vmax.f32 %v485, %v525
      %v566 = vmax.f32 %v486, %v526
      %v567 = vmax.f32 %v487, %v527
      %v568 = vmax.f32 %v488, %v528
      %v569 = vmax.f32 %v489, %v529
      %v570 = vmax.f32 %v490, %v530
      %v571 = vmax.f32 %v491, %v531
      %v572 = vmax.f32 %v492, %v532
      %v573 = vld [vmem:[#allocation2 + $0xa] sm:$0xff]
      %v574 = vld [vmem:[#allocation2 + $0x12] sm:$0xff]
      %v575 = vld [vmem:[#allocation2 + $0x2a] sm:$0xff]
      %v576 = vld [vmem:[#allocation2 + $0x32] sm:$0xff]
      %v577 = vld [vmem:[#allocation2 + $0x4a] sm:$0xff]
      %v578 = vld [vmem:[#allocation2 + $0x52] sm:$0xff]
      %v579 = vld [vmem:[#allocation2 + $0x6a] sm:$0xff]
      %v580 = vld [vmem:[#allocation2 + $0x72] sm:$0xff]
      %v581 = vld [vmem:[#allocation2 + $0x8a] sm:$0xff]
      %v582 = vld [vmem:[#allocation2 + $0x92] sm:$0xff]
      %v583 = vld [vmem:[#allocation2 + $0xaa] sm:$0xff]
      %v584 = vld [vmem:[#allocation2 + $0xb2] sm:$0xff]
      %v585 = vld [vmem:[#allocation2 + $0xca] sm:$0xff]
      %v586 = vld [vmem:[#allocation2 + $0xd2] sm:$0xff]
      %v587 = vld [vmem:[#allocation2 + $0xea] sm:$0xff]
      %v588 = vld [vmem:[#allocation2 + $0xf2] sm:$0xff]
      %v589 = vld [vmem:[#allocation2 + $0x10a] sm:$0xff]
      %v590 = vld [vmem:[#allocation2 + $0x112] sm:$0xff]
      %v591 = vld [vmem:[#allocation2 + $0x12a] sm:$0xff]
      %v592 = vld [vmem:[#allocation2 + $0x132] sm:$0xff]
      %v593 = vld [vmem:[#allocation2 + $0x14a] sm:$0xff]
      %v594 = vld [vmem:[#allocation2 + $0x152] sm:$0xff]
      %v595 = vld [vmem:[#allocation2 + $0x16a] sm:$0xff]
      %v596 = vld [vmem:[#allocation2 + $0x172] sm:$0xff]
      %v597 = vld [vmem:[#allocation2 + $0x18a] sm:$0xff]
      %v598 = vld [vmem:[#allocation2 + $0x192] sm:$0xff]
      %v599 = vld [vmem:[#allocation2 + $0x1aa] sm:$0xff]
      %v600 = vld [vmem:[#allocation2 + $0x1b2] sm:$0xff]
      %v601 = vld [vmem:[#allocation2 + $0x1ca] sm:$0xff]
      %v602 = vld [vmem:[#allocation2 + $0x1d2] sm:$0xff]
      %v603 = vld [vmem:[#allocation2 + $0x1ea] sm:$0xff]
      %v604 = vld [vmem:[#allocation2 + $0x1f2] sm:$0xff]
      %v605 = vld [vmem:[#allocation2 + $0x20a] sm:$0xff]
      %v606 = vld [vmem:[#allocation2 + $0x212] sm:$0xff]
      %v607 = vld [vmem:[#allocation2 + $0x22a] sm:$0xff]
      %v608 = vld [vmem:[#allocation2 + $0x232] sm:$0xff]
      %v609 = vld [vmem:[#allocation2 + $0x24a] sm:$0xff]
      %v610 = vld [vmem:[#allocation2 + $0x252] sm:$0xff]
      %v611 = vld [vmem:[#allocation2 + $0x26a] sm:$0xff]
      %v612 = vld [vmem:[#allocation2 + $0x272] sm:$0xff]
      %v613 = vmax.f32 %v533, %v573
      %v614 = vmax.f32 %v534, %v574
      %v615 = vmax.f32 %v535, %v575
      %v616 = vmax.f32 %v536, %v576
      %v617 = vmax.f32 %v537, %v577
      %v618 = vmax.f32 %v538, %v578
      %v619 = vmax.f32 %v539, %v579
      %v620 = vmax.f32 %v540, %v580
      %v621 = vmax.f32 %v541, %v581
      %v622 = vmax.f32 %v542, %v582
      %v623 = vmax.f32 %v543, %v583
      %v624 = vmax.f32 %v544, %v584
      %v625 = vmax.f32 %v545, %v585
      %v626 = vmax.f32 %v546, %v586
      %v627 = vmax.f32 %v547, %v587
      %v628 = vmax.f32 %v548, %v588
      %v629 = vmax.f32 %v549, %v589
      %v630 = vmax.f32 %v550, %v590
      %v631 = vmax.f32 %v551, %v591
      %v632 = vmax.f32 %v552, %v592
      %v633 = vmax.f32 %v553, %v593
      %v634 = vmax.f32 %v554, %v594
      %v635 = vmax.f32 %v555, %v595
      %v636 = vmax.f32 %v556, %v596
      %v637 = vmax.f32 %v557, %v597
      %v638 = vmax.f32 %v558, %v598
      %v639 = vmax.f32 %v559, %v599
      %v640 = vmax.f32 %v560, %v600
      %v641 = vmax.f32 %v561, %v601
      %v642 = vmax.f32 %v562, %v602
      %v643 = vmax.f32 %v563, %v603
      %v644 = vmax.f32 %v564, %v604
      %v645 = vmax.f32 %v565, %v605
      %v646 = vmax.f32 %v566, %v606
      %v647 = vmax.f32 %v567, %v607
      %v648 = vmax.f32 %v568, %v608
      %v649 = vmax.f32 %v569, %v609
      %v650 = vmax.f32 %v570, %v610
      %v651 = vmax.f32 %v571, %v611
      %v652 = vmax.f32 %v572, %v612
      %v653 = vmax.f32 %v617, %v613
      %v654 = vmax.f32 %v618, %v614
      %v655 = vmax.f32 %v619, %v615
      %v656 = vmax.f32 %v620, %v616
      %v657 = vmax.f32 %v621, %v617
      %v658 = vmax.f32 %v622, %v618
      %v659 = vmax.f32 %v623, %v619
      %v660 = vmax.f32 %v624, %v620
      %v661 = vmax.f32 %v625, %v621
      %v662 = vmax.f32 %v626, %v622
      %v663 = vmax.f32 %v627, %v623
      %v664 = vmax.f32 %v628, %v624
      %v665 = vmax.f32 %v629, %v625
      %v666 = vmax.f32 %v630, %v626
      %v667 = vmax.f32 %v631, %v627
      %v668 = vmax.f32 %v632, %v628
      %v669 = vmax.f32 %v633, %v629
      %v670 = vmax.f32 %v634, %v630
      %v671 = vmax.f32 %v635, %v631
      %v672 = vmax.f32 %v636, %v632
      %v673 = vmax.f32 %v637, %v633
      %v674 = vmax.f32 %v638, %v634
      %v675 = vmax.f32 %v639, %v635
      %v676 = vmax.f32 %v640, %v636
      %v677 = vmax.f32 %v641, %v637
      %v678 = vmax.f32 %v642, %v638
      %v679 = vmax.f32 %v643, %v639
      %v680 = vmax.f32 %v644, %v640
      %v681 = vmax.f32 %v645, %v641
      %v682 = vmax.f32 %v646, %v642
      %v683 = vmax.f32 %v647, %v643
      %v684 = vmax.f32 %v648, %v644
      %v685 = vmax.f32 %v653, %v615
      %v686 = vmax.f32 %v654, %v616
      %v687 = vmax.f32 %v655, %v617
      %v688 = vmax.f32 %v656, %v618
      %v689 = vmax.f32 %v657, %v619
      %v690 = vmax.f32 %v658, %v620
      %v691 = vmax.f32 %v659, %v621
      %v692 = vmax.f32 %v660, %v622
      %v693 = vmax.f32 %v661, %v623
      %v694 = vmax.f32 %v662, %v624
      %v695 = vmax.f32 %v663, %v625
      %v696 = vmax.f32 %v664, %v626
      %v697 = vmax.f32 %v665, %v627
      %v698 = vmax.f32 %v666, %v628
      %v699 = vmax.f32 %v667, %v629
      %v700 = vmax.f32 %v668, %v630
      %v701 = vmax.f32 %v669, %v631
      %v702 = vmax.f32 %v670, %v632
      %v703 = vmax.f32 %v671, %v633
      %v704 = vmax.f32 %v672, %v634
      %v705 = vmax.f32 %v673, %v635
      %v706 = vmax.f32 %v674, %v636
      %v707 = vmax.f32 %v675, %v637
      %v708 = vmax.f32 %v676, %v638
      %v709 = vmax.f32 %v677, %v639
      %v710 = vmax.f32 %v678, %v640
      %v711 = vmax.f32 %v679, %v641
      %v712 = vmax.f32 %v680, %v642
      %v713 = vmax.f32 %v681, %v643
      %v714 = vmax.f32 %v682, %v644
      %v715 = vmax.f32 %v683, %v645
      %v716 = vmax.f32 %v684, %v646
      %v717 = vmax.f32 %v685, %v619
      %v718 = vmax.f32 %v686, %v620
      %v719 = vmax.f32 %v687, %v621
      %v720 = vmax.f32 %v688, %v622
      %v721 = vmax.f32 %v689, %v623
      %v722 = vmax.f32 %v690, %v624
      %v723 = vmax.f32 %v691, %v625
      %v724 = vmax.f32 %v692, %v626
      %v725 = vmax.f32 %v693, %v627
      %v726 = vmax.f32 %v694, %v628
      %v727 = vmax.f32 %v695, %v629
      %v728 = vmax.f32 %v696, %v630
      %v729 = vmax.f32 %v697, %v631
      %v730 = vmax.f32 %v698, %v632
      %v731 = vmax.f32 %v699, %v633
      %v732 = vmax.f32 %v700, %v634
      %v733 = vmax.f32 %v701, %v635
      %v734 = vmax.f32 %v702, %v636
      %v735 = vmax.f32 %v703, %v637
      %v736 = vmax.f32 %v704, %v638
      %v737 = vmax.f32 %v705, %v639
      %v738 = vmax.f32 %v706, %v640
      %v739 = vmax.f32 %v707, %v641
      %v740 = vmax.f32 %v708, %v642
      %v741 = vmax.f32 %v709, %v643
      %v742 = vmax.f32 %v710, %v644
      %v743 = vmax.f32 %v711, %v645
      %v744 = vmax.f32 %v712, %v646
      %v745 = vmax.f32 %v713, %v647
      %v746 = vmax.f32 %v714, %v648
      %v747 = vmax.f32 %v715, %v649
      %v748 = vmax.f32 %v716, %v650
      %v749 = vmax.f32 %v717, %v621
      %v750 = vmax.f32 %v718, %v622
      %v751 = vmax.f32 %v719, %v623
      %v752 = vmax.f32 %v720, %v624
      %v753 = vmax.f32 %v721, %v625
      %v754 = vmax.f32 %v722, %v626
      %v755 = vmax.f32 %v723, %v627
      %v756 = vmax.f32 %v724, %v628
      %v757 = vmax.f32 %v725, %v629
      %v758 = vmax.f32 %v726, %v630
      %v759 = vmax.f32 %v727, %v631
      %v760 = vmax.f32 %v728, %v632
      %v761 = vmax.f32 %v729, %v633
      %v762 = vmax.f32 %v730, %v634
      %v763 = vmax.f32 %v731, %v635
      %v764 = vmax.f32 %v732, %v636
      %v765 = vmax.f32 %v733, %v637
      %v766 = vmax.f32 %v734, %v638
      %v767 = vmax.f32 %v735, %v639
      %v768 = vmax.f32 %v736, %v640
      %v769 = vmax.f32 %v737, %v641
      %v770 = vmax.f32 %v738, %v642
      %v771 = vmax.f32 %v739, %v643
      %v772 = vmax.f32 %v740, %v644
      %v773 = vmax.f32 %v741, %v645
      %v774 = vmax.f32 %v742, %v646
      %v775 = vmax.f32 %v743, %v647
      %v776 = vmax.f32 %v744, %v648
      %v777 = vmax.f32 %v745, %v649
      %v778 = vmax.f32 %v746, %v650
      %v779 = vmax.f32 %v747, %v651
      %v780 = vmax.f32 %v748, %v652
      %v781 = vpack.c.bf16 %v750, %v749
      %v782 = vpack.c.bf16 %v752, %v751
      %v783 = vpack.c.bf16 %v754, %v753
      %v784 = vpack.c.bf16 %v756, %v755
      %v785 = vpack.c.bf16 %v758, %v757
      %v786 = vpack.c.bf16 %v760, %v759
      %v787 = vpack.c.bf16 %v762, %v761
      %v788 = vpack.c.bf16 %v764, %v763
      %v789 = vpack.c.bf16 %v766, %v765
      %v790 = vpack.c.bf16 %v768, %v767
      %v791 = vpack.c.bf16 %v770, %v769
      %v792 = vpack.c.bf16 %v772, %v771
      %v793 = vpack.c.bf16 %v774, %v773
      %v794 = vpack.c.bf16 %v776, %v775
      %v795 = vpack.c.bf16 %v778, %v777
      %v796 = vpack.c.bf16 %v780, %v779
      %v797 = vld [vmem:[%s1] sm:$0x3]
      %v799 = vsel %vm218, %v781, 0
      %v802 = vsel %vm218, %v782, 0
      %v805 = vsel %vm218, %v783, 0
      %v808 = vsel %vm218, %v784, 0
      %v811 = vsel %vm218, %v785, 0
      %v814 = vsel %vm218, %v786, 0
      %v817 = vsel %vm218, %v787, 0
      %v820 = vsel %vm218, %v788, 0
      %v823 = vsel %vm218, %v789, 0
      %v826 = vsel %vm218, %v790, 0
      %v829 = vsel %vm218, %v791, 0
      %v832 = vsel %vm218, %v792, 0
      %v835 = vsel %vm218, %v793, 0
      %v838 = vsel %vm218, %v794, 0
      %v841 = vsel %vm218, %v795, 0
      %v844 = vsel %vm218, %v796, 0
      %vm846 = vcmask 1041408
      %v848 = vsel %vm846, %v797, 0
      %850 = vmatprep.subr.bf16.mxu0 0
      %851 = vmatpush1.bf16.msra.mxu0 %v848
      %852 = vmatprep.subr.bf16.mxu0 0
      %853 = vmatpush1.bf16.msra.mxu0 0
      %854 = vmatprep.subr.bf16.mxu0 0
      %855 = vmatpush1.bf16.msra.mxu0 0
      %856 = vmatprep.subr.bf16.mxu0 0
      %857 = vmatpush1.bf16.msra.mxu0 0
      %858 = vmatprep.subr.bf16.mxu0 0
      %859 = vmatpush1.bf16.msra.mxu0 0
      %860 = vmatprep.subr.bf16.mxu0 0
      %861 = vmatpush1.bf16.msra.mxu0 0
      %862 = vmatprep.subr.bf16.mxu0 0
      %863 = vmatpush1.bf16.msra.mxu0 0
      %864 = vmatprep.subr.bf16.mxu0 0
      %865 = vmatpush1.bf16.msra.mxu0 0
      %866 = vmatprep.subr.bf16.mxu0 0
      %867 = vmatpush1.bf16.msra.mxu0 0
      %868 = vmatprep.subr.bf16.mxu0 0
      %869 = vmatpush1.bf16.msra.mxu0 0
      %870 = vmatprep.subr.bf16.mxu0 0
      %871 = vmatpush1.bf16.msra.mxu0 0
      %872 = vmatprep.subr.bf16.mxu0 0
      %873 = vmatpush1.bf16.msra.mxu0 0
      %874 = vmatprep.subr.bf16.mxu0 0
      %875 = vmatpush1.bf16.msra.mxu0 0
      %876 = vmatprep.subr.bf16.mxu0 0
      %877 = vmatpush1.bf16.msra.mxu0 0
      %878 = vmatprep.subr.bf16.mxu0 0
      %879 = vmatpush1.bf16.msra.mxu0 0
      %880 = vmatprep.subr.bf16.mxu0 0
      %881 = vmatpush1.bf16.msra.mxu0 0
      %882 = vmatprep.mubr.bf16.mxu0 0
      %883 = vmatmul.mubr.bf16.gmra.mrb[0].mxu0 %v799
      %v884 = vpop.f32.mrb[0].mxu0
      %v885 = vadd.f32 0.0, %v884
      %v886 = vpop.f32.mrb[0].mxu0
      %v887 = vpop.f32.mrb[0].mxu0
      %v888 = vadd.f32 0.0, %v887
      %v889 = vpop.f32.mrb[0].mxu0
      %890 = vmatprep.mubr.bf16.mxu0 0
      %891 = vmatmul.mubr.bf16.gmra.mrb[0].mxu0 %v802
      %v892 = vpop.f32.mrb[0].mxu0
      %v893 = vadd.f32 0.0, %v892
      %v894 = vpop.f32.mrb[0].mxu0
      %v895 = vpop.f32.mrb[0].mxu0
      %v896 = vadd.f32 0.0, %v895
      %v897 = vpop.f32.mrb[0].mxu0
      %898 = vmatprep.mubr.bf16.mxu0 0
      %899 = vmatmul.mubr.bf16.gmra.mrb[0].mxu0 %v805
      %v900 = vpop.f32.mrb[0].mxu0
      %v901 = vadd.f32 0.0, %v900
      %v902 = vpop.f32.mrb[0].mxu0
      %v903 = vpop.f32.mrb[0].mxu0
      %v904 = vadd.f32 0.0, %v903
      %v905 = vpop.f32.mrb[0].mxu0
      %906 = vmatprep.mubr.bf16.mxu0 0
      %907 = vmatmul.mubr.bf16.gmra.mrb[0].mxu0 %v808
      %v908 = vpop.f32.mrb[0].mxu0
      %v909 = vadd.f32 0.0, %v908
      %v910 = vpop.f32.mrb[0].mxu0
      %v911 = vpop.f32.mrb[0].mxu0
      %v912 = vadd.f32 0.0, %v911
      %v913 = vpop.f32.mrb[0].mxu0
      %914 = vmatprep.mubr.bf16.mxu0 0
      %915 = vmatmul.mubr.bf16.gmra.mrb[0].mxu0 %v811
      %v916 = vpop.f32.mrb[0].mxu0
      %v917 = vadd.f32 0.0, %v916
      %v918 = vpop.f32.mrb[0].mxu0
      %v919 = vpop.f32.mrb[0].mxu0
      %v920 = vadd.f32 0.0, %v919
      %v921 = vpop.f32.mrb[0].mxu0
      %922 = vmatprep.mubr.bf16.mxu0 0
      %923 = vmatmul.mubr.bf16.gmra.mrb[0].mxu0 %v814
      %v924 = vpop.f32.mrb[0].mxu0
      %v925 = vadd.f32 0.0, %v924
      %v926 = vpop.f32.mrb[0].mxu0
      %v927 = vpop.f32.mrb[0].mxu0
      %v928 = vadd.f32 0.0, %v927
      %v929 = vpop.f32.mrb[0].mxu0
      %930 = vmatprep.mubr.bf16.mxu0 0
      %931 = vmatmul.mubr.bf16.gmra.mrb[0].mxu0 %v817
      %v932 = vpop.f32.mrb[0].mxu0
      %v933 = vadd.f32 0.0, %v932
      %v934 = vpop.f32.mrb[0].mxu0
      %v935 = vpop.f32.mrb[0].mxu0
      %v936 = vadd.f32 0.0, %v935
      %v937 = vpop.f32.mrb[0].mxu0
      %938 = vmatprep.mubr.bf16.mxu0 0
      %939 = vmatmul.mubr.bf16.gmra.mrb[0].mxu0 %v820
      %v940 = vpop.f32.mrb[0].mxu0
      %v941 = vadd.f32 0.0, %v940
      %v942 = vpop.f32.mrb[0].mxu0
      %v943 = vpop.f32.mrb[0].mxu0
      %v944 = vadd.f32 0.0, %v943
      %v945 = vpop.f32.mrb[0].mxu0
      %946 = vmatprep.mubr.bf16.mxu0 0
      %947 = vmatmul.mubr.bf16.gmra.mrb[0].mxu0 %v823
      %v948 = vpop.f32.mrb[0].mxu0
      %v949 = vadd.f32 0.0, %v948
      %v950 = vpop.f32.mrb[0].mxu0
      %v951 = vpop.f32.mrb[0].mxu0
      %v952 = vadd.f32 0.0, %v951
      %v953 = vpop.f32.mrb[0].mxu0
      %954 = vmatprep.mubr.bf16.mxu0 0
      %955 = vmatmul.mubr.bf16.gmra.mrb[0].mxu0 %v826
      %v956 = vpop.f32.mrb[0].mxu0
      %v957 = vadd.f32 0.0, %v956
      %v958 = vpop.f32.mrb[0].mxu0
      %v959 = vpop.f32.mrb[0].mxu0
      %v960 = vadd.f32 0.0, %v959
      %v961 = vpop.f32.mrb[0].mxu0
      %962 = vmatprep.mubr.bf16.mxu0 0
      %963 = vmatmul.mubr.bf16.gmra.mrb[0].mxu0 %v829
      %v964 = vpop.f32.mrb[0].mxu0
      %v965 = vadd.f32 0.0, %v964
      %v966 = vpop.f32.mrb[0].mxu0
      %v967 = vpop.f32.mrb[0].mxu0
      %v968 = vadd.f32 0.0, %v967
      %v969 = vpop.f32.mrb[0].mxu0
      %970 = vmatprep.mubr.bf16.mxu0 0
      %971 = vmatmul.mubr.bf16.gmra.mrb[0].mxu0 %v832
      %v972 = vpop.f32.mrb[0].mxu0
      %v973 = vadd.f32 0.0, %v972
      %v974 = vpop.f32.mrb[0].mxu0
      %v975 = vpop.f32.mrb[0].mxu0
      %v976 = vadd.f32 0.0, %v975
      %v977 = vpop.f32.mrb[0].mxu0
      %978 = vmatprep.mubr.bf16.mxu0 0
      %979 = vmatmul.mubr.bf16.gmra.mrb[0].mxu0 %v835
      %v980 = vpop.f32.mrb[0].mxu0
      %v981 = vadd.f32 0.0, %v980
      %v982 = vpop.f32.mrb[0].mxu0
      %v983 = vpop.f32.mrb[0].mxu0
      %v984 = vadd.f32 0.0, %v983
      %v985 = vpop.f32.mrb[0].mxu0
      %986 = vmatprep.mubr.bf16.mxu0 0
      %987 = vmatmul.mubr.bf16.gmra.mrb[0].mxu0 %v838
      %v988 = vpop.f32.mrb[0].mxu0
      %v989 = vadd.f32 0.0, %v988
      %v990 = vpop.f32.mrb[0].mxu0
      %v991 = vpop.f32.mrb[0].mxu0
      %v992 = vadd.f32 0.0, %v991
      %v993 = vpop.f32.mrb[0].mxu0
      %994 = vmatprep.mubr.bf16.mxu0 0
      %995 = vmatmul.mubr.bf16.gmra.mrb[0].mxu0 %v841
      %v996 = vpop.f32.mrb[0].mxu0
      %v997 = vadd.f32 0.0, %v996
      %v998 = vpop.f32.mrb[0].mxu0
      %v999 = vpop.f32.mrb[0].mxu0
      %v1000 = vadd.f32 0.0, %v999
      %v1001 = vpop.f32.mrb[0].mxu0
      %1002 = vmatprep.mubr.bf16.mxu0 0
      %1003 = vmatmul.mubr.bf16.gmra.mrb[0].mxu0 %v844
      %v1004 = vpop.f32.mrb[0].mxu0
      %v1005 = vadd.f32 0.0, %v1004
      %v1006 = vpop.f32.mrb[0].mxu0
      %v1007 = vpop.f32.mrb[0].mxu0
      %v1008 = vadd.f32 0.0, %v1007
      %v1009 = vpop.f32.mrb[0].mxu0
      %1010 = vdwg.mxu0
      %v1011 = vld [vmem:[%s143] sm:$0xff]
      %v1012 = vld [vmem:[%s143 + $0x8] sm:$0xff]
      %v1013 = vld [vmem:[%s143 + $0x10] sm:$0xff]
      %v1014 = vld [vmem:[%s143 + $0x18] sm:$0xff]
      %v1015 = vld [vmem:[%s143 + $0x20] sm:$0xff]
      %v1016 = vld [vmem:[%s143 + $0x28] sm:$0xff]
      %v1017 = vld [vmem:[%s143 + $0x30] sm:$0xff]
      %v1018 = vld [vmem:[%s143 + $0x38] sm:$0xff]
      %v1019 = vld [vmem:[%s143 + $0x40] sm:$0xff]
      %v1020 = vld [vmem:[%s143 + $0x48] sm:$0xff]
      %v1021 = vld [vmem:[%s143 + $0x50] sm:$0xff]
      %v1022 = vld [vmem:[%s143 + $0x58] sm:$0xff]
      %v1023 = vld [vmem:[%s143 + $0x60] sm:$0xff]
      %v1024 = vld [vmem:[%s143 + $0x68] sm:$0xff]
      %v1025 = vld [vmem:[%s143 + $0x70] sm:$0xff]
      %v1026 = vld [vmem:[%s143 + $0x78] sm:$0xff]
      %v1027 = vld [vmem:[%s143 + $0x80] sm:$0xff]
      %v1028 = vld [vmem:[%s143 + $0x88] sm:$0xff]
      %v1029 = vld [vmem:[%s143 + $0x90] sm:$0xff]
      %v1030 = vld [vmem:[%s143 + $0x98] sm:$0xff]
      %v1031 = vld [vmem:[%s143 + $0xa0] sm:$0xff]
      %v1032 = vld [vmem:[%s143 + $0xa8] sm:$0xff]
      %v1033 = vld [vmem:[%s143 + $0xb0] sm:$0xff]
      %v1034 = vld [vmem:[%s143 + $0xb8] sm:$0xff]
      %v1035 = vld [vmem:[%s143 + $0xc0] sm:$0xff]
      %v1036 = vld [vmem:[%s143 + $0xc8] sm:$0xff]
      %v1037 = vld [vmem:[%s143 + $0xd0] sm:$0xff]
      %v1038 = vld [vmem:[%s143 + $0xd8] sm:$0xff]
      %v1039 = vld [vmem:[%s143 + $0xe0] sm:$0xff]
      %v1040 = vld [vmem:[%s143 + $0xe8] sm:$0xff]
      %v1041 = vld [vmem:[%s143 + $0xf0] sm:$0xff]
      %v1042 = vld [vmem:[%s143 + $0xf8] sm:$0xff]
      %v1043 = vadd.f32 %v1011, %v885
      %v1044 = vadd.f32 %v1012, %v888
      %v1045 = vadd.f32 %v1013, %v893
      %v1046 = vadd.f32 %v1014, %v896
      %v1047 = vadd.f32 %v1015, %v901
      %v1048 = vadd.f32 %v1016, %v904
      %v1049 = vadd.f32 %v1017, %v909
      %v1050 = vadd.f32 %v1018, %v912
      %v1051 = vadd.f32 %v1019, %v917
      %v1052 = vadd.f32 %v1020, %v920
      %v1053 = vadd.f32 %v1021, %v925
      %v1054 = vadd.f32 %v1022, %v928
      %v1055 = vadd.f32 %v1023, %v933
      %v1056 = vadd.f32 %v1024, %v936
      %v1057 = vadd.f32 %v1025, %v941
      %v1058 = vadd.f32 %v1026, %v944
      %v1059 = vadd.f32 %v1027, %v949
      %v1060 = vadd.f32 %v1028, %v952
      %v1061 = vadd.f32 %v1029, %v957
      %v1062 = vadd.f32 %v1030, %v960
      %v1063 = vadd.f32 %v1031, %v965
      %v1064 = vadd.f32 %v1032, %v968
      %v1065 = vadd.f32 %v1033, %v973
      %v1066 = vadd.f32 %v1034, %v976
      %v1067 = vadd.f32 %v1035, %v981
      %v1068 = vadd.f32 %v1036, %v984
      %v1069 = vadd.f32 %v1037, %v989
      %v1070 = vadd.f32 %v1038, %v992
      %v1071 = vadd.f32 %v1039, %v997
      %v1072 = vadd.f32 %v1040, %v1000
      %v1073 = vadd.f32 %v1041, %v1005
      %v1074 = vadd.f32 %v1042, %v1008
      %1075 = vst.msk [vmem:[%s143] sm:$0xff] %vm218, %v1043
      %1076 = vst.msk [vmem:[%s143 + $0x8] sm:$0xff] %vm218, %v1044
      %1077 = vst.msk [vmem:[%s143 + $0x10] sm:$0xff] %vm218, %v1045
      %1078 = vst.msk [vmem:[%s143 + $0x18] sm:$0xff] %vm218, %v1046
      %1079 = vst.msk [vmem:[%s143 + $0x20] sm:$0xff] %vm218, %v1047
      %1080 = vst.msk [vmem:[%s143 + $0x28] sm:$0xff] %vm218, %v1048
      %1081 = vst.msk [vmem:[%s143 + $0x30] sm:$0xff] %vm218, %v1049
      %1082 = vst.msk [vmem:[%s143 + $0x38] sm:$0xff] %vm218, %v1050
      %1083 = vst.msk [vmem:[%s143 + $0x40] sm:$0xff] %vm218, %v1051
      %1084 = vst.msk [vmem:[%s143 + $0x48] sm:$0xff] %vm218, %v1052
      %1085 = vst.msk [vmem:[%s143 + $0x50] sm:$0xff] %vm218, %v1053
      %1086 = vst.msk [vmem:[%s143 + $0x58] sm:$0xff] %vm218, %v1054
      %1087 = vst.msk [vmem:[%s143 + $0x60] sm:$0xff] %vm218, %v1055
      %1088 = vst.msk [vmem:[%s143 + $0x68] sm:$0xff] %vm218, %v1056
      %1089 = vst.msk [vmem:[%s143 + $0x70] sm:$0xff] %vm218, %v1057
      %1090 = vst.msk [vmem:[%s143 + $0x78] sm:$0xff] %vm218, %v1058
      %1091 = vst.msk [vmem:[%s143 + $0x80] sm:$0xff] %vm218, %v1059
      %1092 = vst.msk [vmem:[%s143 + $0x88] sm:$0xff] %vm218, %v1060
      %1093 = vst.msk [vmem:[%s143 + $0x90] sm:$0xff] %vm218, %v1061
      %1094 = vst.msk [vmem:[%s143 + $0x98] sm:$0xff] %vm218, %v1062
      %1095 = vst.msk [vmem:[%s143 + $0xa0] sm:$0xff] %vm218, %v1063
      %1096 = vst.msk [vmem:[%s143 + $0xa8] sm:$0xff] %vm218, %v1064
      %1097 = vst.msk [vmem:[%s143 + $0xb0] sm:$0xff] %vm218, %v1065
      %1098 = vst.msk [vmem:[%s143 + $0xb8] sm:$0xff] %vm218, %v1066
      %1099 = vst.msk [vmem:[%s143 + $0xc0] sm:$0xff] %vm218, %v1067
      %1100 = vst.msk [vmem:[%s143 + $0xc8] sm:$0xff] %vm218, %v1068
      %1101 = vst.msk [vmem:[%s143 + $0xd0] sm:$0xff] %vm218, %v1069
      %1102 = vst.msk [vmem:[%s143 + $0xd8] sm:$0xff] %vm218, %v1070
      %1103 = vst.msk [vmem:[%s143 + $0xe0] sm:$0xff] %vm218, %v1071
      %1104 = vst.msk [vmem:[%s143 + $0xe8] sm:$0xff] %vm218, %v1072
      %1105 = vst.msk [vmem:[%s143 + $0xf0] sm:$0xff] %vm218, %v1073
      %1106 = vst.msk [vmem:[%s143 + $0xf8] sm:$0xff] %vm218, %v1074
      %1107 = vst.msk [vmem:[%s260 + $0x8] sm:$0xff] %vm218, %v885
      %1108 = vst.msk [vmem:[%s260 + $0x10] sm:$0xff] %vm218, %v888
      %1109 = vst.msk [vmem:[%s260 + $0x28] sm:$0xff] %vm218, %v893
      %1110 = vst.msk [vmem:[%s260 + $0x30] sm:$0xff] %vm218, %v896
      %1111 = vst.msk [vmem:[%s260 + $0x48] sm:$0xff] %vm218, %v901
      %1112 = vst.msk [vmem:[%s260 + $0x50] sm:$0xff] %vm218, %v904
      %1113 = vst.msk [vmem:[%s260 + $0x68] sm:$0xff] %vm218, %v909
      %1114 = vst.msk [vmem:[%s260 + $0x70] sm:$0xff] %vm218, %v912
      %1115 = vst.msk [vmem:[%s260 + $0x88] sm:$0xff] %vm218, %v917
      %1116 = vst.msk [vmem:[%s260 + $0x90] sm:$0xff] %vm218, %v920
      %1117 = vst.msk [vmem:[%s260 + $0xa8] sm:$0xff] %vm218, %v925
      %1118 = vst.msk [vmem:[%s260 + $0xb0] sm:$0xff] %vm218, %v928
      %1119 = vst.msk [vmem:[%s260 + $0xc8] sm:$0xff] %vm218, %v933
      %1120 = vst.msk [vmem:[%s260 + $0xd0] sm:$0xff] %vm218, %v936
      %1121 = vst.msk [vmem:[%s260 + $0xe8] sm:$0xff] %vm218, %v941
      %1122 = vst.msk [vmem:[%s260 + $0xf0] sm:$0xff] %vm218, %v944
      %1123 = vst.msk [vmem:[%s260 + $0x108] sm:$0xff] %vm218, %v949
      %1124 = vst.msk [vmem:[%s260 + $0x110] sm:$0xff] %vm218, %v952
      %1125 = vst.msk [vmem:[%s260 + $0x128] sm:$0xff] %vm218, %v957
      %1126 = vst.msk [vmem:[%s260 + $0x130] sm:$0xff] %vm218, %v960
      %1127 = vst.msk [vmem:[%s260 + $0x148] sm:$0xff] %vm218, %v965
      %1128 = vst.msk [vmem:[%s260 + $0x150] sm:$0xff] %vm218, %v968
      %1129 = vst.msk [vmem:[%s260 + $0x168] sm:$0xff] %vm218, %v973
      %1130 = vst.msk [vmem:[%s260 + $0x170] sm:$0xff] %vm218, %v976
      %1131 = vst.msk [vmem:[%s260 + $0x188] sm:$0xff] %vm218, %v981
      %1132 = vst.msk [vmem:[%s260 + $0x190] sm:$0xff] %vm218, %v984
      %1133 = vst.msk [vmem:[%s260 + $0x1a8] sm:$0xff] %vm218, %v989
      %1134 = vst.msk [vmem:[%s260 + $0x1b0] sm:$0xff] %vm218, %v992
      %1135 = vst.msk [vmem:[%s260 + $0x1c8] sm:$0xff] %vm218, %v997
      %1136 = vst.msk [vmem:[%s260 + $0x1d0] sm:$0xff] %vm218, %v1000
      %1137 = vst.msk [vmem:[%s260 + $0x1e8] sm:$0xff] %vm218, %v1005
      %1138 = vst.msk [vmem:[%s260 + $0x1f0] sm:$0xff] %vm218, %v1008
      %v1139 = vld [vmem:[#allocation2 + $0x6] sm:$0xff]
      %v1140 = vld [vmem:[#allocation2 + $0xe] sm:$0xff]
      %v1141 = vld [vmem:[#allocation2 + $0x26] sm:$0xff]
      %v1142 = vld [vmem:[#allocation2 + $0x2e] sm:$0xff]
      %v1143 = vld [vmem:[#allocation2 + $0x46] sm:$0xff]
      %v1144 = vld [vmem:[#allocation2 + $0x4e] sm:$0xff]
      %v1145 = vld [vmem:[#allocation2 + $0x66] sm:$0xff]
      %v1146 = vld [vmem:[#allocation2 + $0x6e] sm:$0xff]
      %v1147 = vld [vmem:[#allocation2 + $0x86] sm:$0xff]
      %v1148 = vld [vmem:[#allocation2 + $0x8e] sm:$0xff]
      %v1149 = vld [vmem:[#allocation2 + $0xa6] sm:$0xff]
      %v1150 = vld [vmem:[#allocation2 + $0xae] sm:$0xff]
      %v1151 = vld [vmem:[#allocation2 + $0xc6] sm:$0xff]
      %v1152 = vld [vmem:[#allocation2 + $0xce] sm:$0xff]
      %v1153 = vld [vmem:[#allocation2 + $0xe6] sm:$0xff]
      %v1154 = vld [vmem:[#allocation2 + $0xee] sm:$0xff]
      %v1155 = vld [vmem:[#allocation2 + $0x106] sm:$0xff]
      %v1156 = vld [vmem:[#allocation2 + $0x10e] sm:$0xff]
      %v1157 = vld [vmem:[#allocation2 + $0x126] sm:$0xff]
      %v1158 = vld [vmem:[#allocation2 + $0x12e] sm:$0xff]
      %v1159 = vld [vmem:[#allocation2 + $0x146] sm:$0xff]
      %v1160 = vld [vmem:[#allocation2 + $0x14e] sm:$0xff]
      %v1161 = vld [vmem:[#allocation2 + $0x166] sm:$0xff]
      %v1162 = vld [vmem:[#allocation2 + $0x16e] sm:$0xff]
      %v1163 = vld [vmem:[#allocation2 + $0x186] sm:$0xff]
      %v1164 = vld [vmem:[#allocation2 + $0x18e] sm:$0xff]
      %v1165 = vld [vmem:[#allocation2 + $0x1a6] sm:$0xff]
      %v1166 = vld [vmem:[#allocation2 + $0x1ae] sm:$0xff]
      %v1167 = vld [vmem:[#allocation2 + $0x1c6] sm:$0xff]
      %v1168 = vld [vmem:[#allocation2 + $0x1ce] sm:$0xff]
      %v1169 = vld [vmem:[#allocation2 + $0x1e6] sm:$0xff]
      %v1170 = vld [vmem:[#allocation2 + $0x1ee] sm:$0xff]
      %v1171 = vld [vmem:[#allocation2 + $0x206] sm:$0xff]
      %v1172 = vld [vmem:[#allocation2 + $0x20e] sm:$0xff]
      %v1173 = vld [vmem:[#allocation2 + $0x226] sm:$0xff]
      %v1174 = vld [vmem:[#allocation2 + $0x22e] sm:$0xff]
      %v1175 = vld [vmem:[#allocation2 + $0x246] sm:$0xff]
      %v1176 = vld [vmem:[#allocation2 + $0x24e] sm:$0xff]
      %v1177 = vld [vmem:[#allocation2 + $0x266] sm:$0xff]
      %v1178 = vld [vmem:[#allocation2 + $0x26e] sm:$0xff]
      %v1179 = vld [vmem:[#allocation2 + $0x7] sm:$0xff]
      %v1180 = vld [vmem:[#allocation2 + $0xf] sm:$0xff]
      %v1181 = vld [vmem:[#allocation2 + $0x27] sm:$0xff]
      %v1182 = vld [vmem:[#allocation2 + $0x2f] sm:$0xff]
      %v1183 = vld [vmem:[#allocation2 + $0x47] sm:$0xff]
      %v1184 = vld [vmem:[#allocation2 + $0x4f] sm:$0xff]
      %v1185 = vld [vmem:[#allocation2 + $0x67] sm:$0xff]
      %v1186 = vld [vmem:[#allocation2 + $0x6f] sm:$0xff]
      %v1187 = vld [vmem:[#allocation2 + $0x87] sm:$0xff]
      %v1188 = vld [vmem:[#allocation2 + $0x8f] sm:$0xff]
      %v1189 = vld [vmem:[#allocation2 + $0xa7] sm:$0xff]
      %v1190 = vld [vmem:[#allocation2 + $0xaf] sm:$0xff]
      %v1191 = vld [vmem:[#allocation2 + $0xc7] sm:$0xff]
      %v1192 = vld [vmem:[#allocation2 + $0xcf] sm:$0xff]
      %v1193 = vld [vmem:[#allocation2 + $0xe7] sm:$0xff]
      %v1194 = vld [vmem:[#allocation2 + $0xef] sm:$0xff]
      %v1195 = vld [vmem:[#allocation2 + $0x107] sm:$0xff]
      %v1196 = vld [vmem:[#allocation2 + $0x10f] sm:$0xff]
      %v1197 = vld [vmem:[#allocation2 + $0x127] sm:$0xff]
      %v1198 = vld [vmem:[#allocation2 + $0x12f] sm:$0xff]
      %v1199 = vld [vmem:[#allocation2 + $0x147] sm:$0xff]
      %v1200 = vld [vmem:[#allocation2 + $0x14f] sm:$0xff]
      %v1201 = vld [vmem:[#allocation2 + $0x167] sm:$0xff]
      %v1202 = vld [vmem:[#allocation2 + $0x16f] sm:$0xff]
      %v1203 = vld [vmem:[#allocation2 + $0x187] sm:$0xff]
      %v1204 = vld [vmem:[#allocation2 + $0x18f] sm:$0xff]
      %v1205 = vld [vmem:[#allocation2 + $0x1a7] sm:$0xff]
      %v1206 = vld [vmem:[#allocation2 + $0x1af] sm:$0xff]
      %v1207 = vld [vmem:[#allocation2 + $0x1c7] sm:$0xff]
      %v1208 = vld [vmem:[#allocation2 + $0x1cf] sm:$0xff]
      %v1209 = vld [vmem:[#allocation2 + $0x1e7] sm:$0xff]
      %v1210 = vld [vmem:[#allocation2 + $0x1ef] sm:$0xff]
      %v1211 = vld [vmem:[#allocation2 + $0x207] sm:$0xff]
      %v1212 = vld [vmem:[#allocation2 + $0x20f] sm:$0xff]
      %v1213 = vld [vmem:[#allocation2 + $0x227] sm:$0xff]
      %v1214 = vld [vmem:[#allocation2 + $0x22f] sm:$0xff]
      %v1215 = vld [vmem:[#allocation2 + $0x247] sm:$0xff]
      %v1216 = vld [vmem:[#allocation2 + $0x24f] sm:$0xff]
      %v1217 = vld [vmem:[#allocation2 + $0x267] sm:$0xff]
      %v1218 = vld [vmem:[#allocation2 + $0x26f] sm:$0xff]
      %v1219 = vmax.f32 %v1139, %v1179
      %v1220 = vmax.f32 %v1140, %v1180
      %v1221 = vmax.f32 %v1141, %v1181
      %v1222 = vmax.f32 %v1142, %v1182
      %v1223 = vmax.f32 %v1143, %v1183
      %v1224 = vmax.f32 %v1144, %v1184
      %v1225 = vmax.f32 %v1145, %v1185
      %v1226 = vmax.f32 %v1146, %v1186
      %v1227 = vmax.f32 %v1147, %v1187
      %v1228 = vmax.f32 %v1148, %v1188
      %v1229 = vmax.f32 %v1149, %v1189
      %v1230 = vmax.f32 %v1150, %v1190
      %v1231 = vmax.f32 %v1151, %v1191
      %v1232 = vmax.f32 %v1152, %v1192
      %v1233 = vmax.f32 %v1153, %v1193
      %v1234 = vmax.f32 %v1154, %v1194
      %v1235 = vmax.f32 %v1155, %v1195
      %v1236 = vmax.f32 %v1156, %v1196
      %v1237 = vmax.f32 %v1157, %v1197
      %v1238 = vmax.f32 %v1158, %v1198
      %v1239 = vmax.f32 %v1159, %v1199
      %v1240 = vmax.f32 %v1160, %v1200
      %v1241 = vmax.f32 %v1161, %v1201
      %v1242 = vmax.f32 %v1162, %v1202
      %v1243 = vmax.f32 %v1163, %v1203
      %v1244 = vmax.f32 %v1164, %v1204
      %v1245 = vmax.f32 %v1165, %v1205
      %v1246 = vmax.f32 %v1166, %v1206
      %v1247 = vmax.f32 %v1167, %v1207
      %v1248 = vmax.f32 %v1168, %v1208
      %v1249 = vmax.f32 %v1169, %v1209
      %v1250 = vmax.f32 %v1170, %v1210
      %v1251 = vmax.f32 %v1171, %v1211
      %v1252 = vmax.f32 %v1172, %v1212
      %v1253 = vmax.f32 %v1173, %v1213
      %v1254 = vmax.f32 %v1174, %v1214
      %v1255 = vmax.f32 %v1175, %v1215
      %v1256 = vmax.f32 %v1176, %v1216
      %v1257 = vmax.f32 %v1177, %v1217
      %v1258 = vmax.f32 %v1178, %v1218
      %v1259 = vld [vmem:[#allocation2 + $0x8] sm:$0xff]
      %v1260 = vld [vmem:[#allocation2 + $0x10] sm:$0xff]
      %v1261 = vld [vmem:[#allocation2 + $0x28] sm:$0xff]
      %v1262 = vld [vmem:[#allocation2 + $0x30] sm:$0xff]
      %v1263 = vld [vmem:[#allocation2 + $0x48] sm:$0xff]
      %v1264 = vld [vmem:[#allocation2 + $0x50] sm:$0xff]
      %v1265 = vld [vmem:[#allocation2 + $0x68] sm:$0xff]
      %v1266 = vld [vmem:[#allocation2 + $0x70] sm:$0xff]
      %v1267 = vld [vmem:[#allocation2 + $0x88] sm:$0xff]
      %v1268 = vld [vmem:[#allocation2 + $0x90] sm:$0xff]
      %v1269 = vld [vmem:[#allocation2 + $0xa8] sm:$0xff]
      %v1270 = vld [vmem:[#allocation2 + $0xb0] sm:$0xff]
      %v1271 = vld [vmem:[#allocation2 + $0xc8] sm:$0xff]
      %v1272 = vld [vmem:[#allocation2 + $0xd0] sm:$0xff]
      %v1273 = vld [vmem:[#allocation2 + $0xe8] sm:$0xff]
      %v1274 = vld [vmem:[#allocation2 + $0xf0] sm:$0xff]
      %v1275 = vld [vmem:[#allocation2 + $0x108] sm:$0xff]
      %v1276 = vld [vmem:[#allocation2 + $0x110] sm:$0xff]
      %v1277 = vld [vmem:[#allocation2 + $0x128] sm:$0xff]
      %v1278 = vld [vmem:[#allocation2 + $0x130] sm:$0xff]
      %v1279 = vld [vmem:[#allocation2 + $0x148] sm:$0xff]
      %v1280 = vld [vmem:[#allocation2 + $0x150] sm:$0xff]
      %v1281 = vld [vmem:[#allocation2 + $0x168] sm:$0xff]
      %v1282 = vld [vmem:[#allocation2 + $0x170] sm:$0xff]
      %v1283 = vld [vmem:[#allocation2 + $0x188] sm:$0xff]
      %v1284 = vld [vmem:[#allocation2 + $0x190] sm:$0xff]
      %v1285 = vld [vmem:[#allocation2 + $0x1a8] sm:$0xff]
      %v1286 = vld [vmem:[#allocation2 + $0x1b0] sm:$0xff]
      %v1287 = vld [vmem:[#allocation2 + $0x1c8] sm:$0xff]
      %v1288 = vld [vmem:[#allocation2 + $0x1d0] sm:$0xff]
      %v1289 = vld [vmem:[#allocation2 + $0x1e8] sm:$0xff]
      %v1290 = vld [vmem:[#allocation2 + $0x1f0] sm:$0xff]
      %v1291 = vld [vmem:[#allocation2 + $0x208] sm:$0xff]
      %v1292 = vld [vmem:[#allocation2 + $0x210] sm:$0xff]
      %v1293 = vld [vmem:[#allocation2 + $0x228] sm:$0xff]
      %v1294 = vld [vmem:[#allocation2 + $0x230] sm:$0xff]
      %v1295 = vld [vmem:[#allocation2 + $0x248] sm:$0xff]
      %v1296 = vld [vmem:[#allocation2 + $0x250] sm:$0xff]
      %v1297 = vld [vmem:[#allocation2 + $0x268] sm:$0xff]
      %v1298 = vld [vmem:[#allocation2 + $0x270] sm:$0xff]
      %v1299 = vmax.f32 %v1219, %v1259
      %v1300 = vmax.f32 %v1220, %v1260
      %v1301 = vmax.f32 %v1221, %v1261
      %v1302 = vmax.f32 %v1222, %v1262
      %v1303 = vmax.f32 %v1223, %v1263
      %v1304 = vmax.f32 %v1224, %v1264
      %v1305 = vmax.f32 %v1225, %v1265
      %v1306 = vmax.f32 %v1226, %v1266
      %v1307 = vmax.f32 %v1227, %v1267
      %v1308 = vmax.f32 %v1228, %v1268
      %v1309 = vmax.f32 %v1229, %v1269
      %v1310 = vmax.f32 %v1230, %v1270
      %v1311 = vmax.f32 %v1231, %v1271
      %v1312 = vmax.f32 %v1232, %v1272
      %v1313 = vmax.f32 %v1233, %v1273
      %v1314 = vmax.f32 %v1234, %v1274
      %v1315 = vmax.f32 %v1235, %v1275
      %v1316 = vmax.f32 %v1236, %v1276
      %v1317 = vmax.f32 %v1237, %v1277
      %v1318 = vmax.f32 %v1238, %v1278
      %v1319 = vmax.f32 %v1239, %v1279
      %v1320 = vmax.f32 %v1240, %v1280
      %v1321 = vmax.f32 %v1241, %v1281
      %v1322 = vmax.f32 %v1242, %v1282
      %v1323 = vmax.f32 %v1243, %v1283
      %v1324 = vmax.f32 %v1244, %v1284
      %v1325 = vmax.f32 %v1245, %v1285
      %v1326 = vmax.f32 %v1246, %v1286
      %v1327 = vmax.f32 %v1247, %v1287
      %v1328 = vmax.f32 %v1248, %v1288
      %v1329 = vmax.f32 %v1249, %v1289
      %v1330 = vmax.f32 %v1250, %v1290
      %v1331 = vmax.f32 %v1251, %v1291
      %v1332 = vmax.f32 %v1252, %v1292
      %v1333 = vmax.f32 %v1253, %v1293
      %v1334 = vmax.f32 %v1254, %v1294
      %v1335 = vmax.f32 %v1255, %v1295
      %v1336 = vmax.f32 %v1256, %v1296
      %v1337 = vmax.f32 %v1257, %v1297
      %v1338 = vmax.f32 %v1258, %v1298
      %v1339 = vld [vmem:[#allocation2 + $0x9] sm:$0xff]
      %v1340 = vld [vmem:[#allocation2 + $0x11] sm:$0xff]
      %v1341 = vld [vmem:[#allocation2 + $0x29] sm:$0xff]
      %v1342 = vld [vmem:[#allocation2 + $0x31] sm:$0xff]
      %v1343 = vld [vmem:[#allocation2 + $0x49] sm:$0xff]
      %v1344 = vld [vmem:[#allocation2 + $0x51] sm:$0xff]
      %v1345 = vld [vmem:[#allocation2 + $0x69] sm:$0xff]
      %v1346 = vld [vmem:[#allocation2 + $0x71] sm:$0xff]
      %v1347 = vld [vmem:[#allocation2 + $0x89] sm:$0xff]
      %v1348 = vld [vmem:[#allocation2 + $0x91] sm:$0xff]
      %v1349 = vld [vmem:[#allocation2 + $0xa9] sm:$0xff]
      %v1350 = vld [vmem:[#allocation2 + $0xb1] sm:$0xff]
      %v1351 = vld [vmem:[#allocation2 + $0xc9] sm:$0xff]
      %v1352 = vld [vmem:[#allocation2 + $0xd1] sm:$0xff]
      %v1353 = vld [vmem:[#allocation2 + $0xe9] sm:$0xff]
      %v1354 = vld [vmem:[#allocation2 + $0xf1] sm:$0xff]
      %v1355 = vld [vmem:[#allocation2 + $0x109] sm:$0xff]
      %v1356 = vld [vmem:[#allocation2 + $0x111] sm:$0xff]
      %v1357 = vld [vmem:[#allocation2 + $0x129] sm:$0xff]
      %v1358 = vld [vmem:[#allocation2 + $0x131] sm:$0xff]
      %v1359 = vld [vmem:[#allocation2 + $0x149] sm:$0xff]
      %v1360 = vld [vmem:[#allocation2 + $0x151] sm:$0xff]
      %v1361 = vld [vmem:[#allocation2 + $0x169] sm:$0xff]
      %v1362 = vld [vmem:[#allocation2 + $0x171] sm:$0xff]
      %v1363 = vld [vmem:[#allocation2 + $0x189] sm:$0xff]
      %v1364 = vld [vmem:[#allocation2 + $0x191] sm:$0xff]
      %v1365 = vld [vmem:[#allocation2 + $0x1a9] sm:$0xff]
      %v1366 = vld [vmem:[#allocation2 + $0x1b1] sm:$0xff]
      %v1367 = vld [vmem:[#allocation2 + $0x1c9] sm:$0xff]
      %v1368 = vld [vmem:[#allocation2 + $0x1d1] sm:$0xff]
      %v1369 = vld [vmem:[#allocation2 + $0x1e9] sm:$0xff]
      %v1370 = vld [vmem:[#allocation2 + $0x1f1] sm:$0xff]
      %v1371 = vld [vmem:[#allocation2 + $0x209] sm:$0xff]
      %v1372 = vld [vmem:[#allocation2 + $0x211] sm:$0xff]
      %v1373 = vld [vmem:[#allocation2 + $0x229] sm:$0xff]
      %v1374 = vld [vmem:[#allocation2 + $0x231] sm:$0xff]
      %v1375 = vld [vmem:[#allocation2 + $0x249] sm:$0xff]
      %v1376 = vld [vmem:[#allocation2 + $0x251] sm:$0xff]
      %v1377 = vld [vmem:[#allocation2 + $0x269] sm:$0xff]
      %v1378 = vld [vmem:[#allocation2 + $0x271] sm:$0xff]
      %v1379 = vmax.f32 %v1299, %v1339
      %v1380 = vmax.f32 %v1300, %v1340
      %v1381 = vmax.f32 %v1301, %v1341
      %v1382 = vmax.f32 %v1302, %v1342
      %v1383 = vmax.f32 %v1303, %v1343
      %v1384 = vmax.f32 %v1304, %v1344
      %v1385 = vmax.f32 %v1305, %v1345
      %v1386 = vmax.f32 %v1306, %v1346
      %v1387 = vmax.f32 %v1307, %v1347
      %v1388 = vmax.f32 %v1308, %v1348
      %v1389 = vmax.f32 %v1309, %v1349
      %v1390 = vmax.f32 %v1310, %v1350
      %v1391 = vmax.f32 %v1311, %v1351
      %v1392 = vmax.f32 %v1312, %v1352
      %v1393 = vmax.f32 %v1313, %v1353
      %v1394 = vmax.f32 %v1314, %v1354
      %v1395 = vmax.f32 %v1315, %v1355
      %v1396 = vmax.f32 %v1316, %v1356
      %v1397 = vmax.f32 %v1317, %v1357
      %v1398 = vmax.f32 %v1318, %v1358
      %v1399 = vmax.f32 %v1319, %v1359
      %v1400 = vmax.f32 %v1320, %v1360
      %v1401 = vmax.f32 %v1321, %v1361
      %v1402 = vmax.f32 %v1322, %v1362
      %v1403 = vmax.f32 %v1323, %v1363
      %v1404 = vmax.f32 %v1324, %v1364
      %v1405 = vmax.f32 %v1325, %v1365
      %v1406 = vmax.f32 %v1326, %v1366
      %v1407 = vmax.f32 %v1327, %v1367
      %v1408 = vmax.f32 %v1328, %v1368
      %v1409 = vmax.f32 %v1329, %v1369
      %v1410 = vmax.f32 %v1330, %v1370
      %v1411 = vmax.f32 %v1331, %v1371
      %v1412 = vmax.f32 %v1332, %v1372
      %v1413 = vmax.f32 %v1333, %v1373
      %v1414 = vmax.f32 %v1334, %v1374
      %v1415 = vmax.f32 %v1335, %v1375
      %v1416 = vmax.f32 %v1336, %v1376
      %v1417 = vmax.f32 %v1337, %v1377
      %v1418 = vmax.f32 %v1338, %v1378
      %v1419 = vld [vmem:[#allocation2 + $0xa] sm:$0xff]
      %v1420 = vld [vmem:[#allocation2 + $0x12] sm:$0xff]
      %v1421 = vld [vmem:[#allocation2 + $0x2a] sm:$0xff]
      %v1422 = vld [vmem:[#allocation2 + $0x32] sm:$0xff]
      %v1423 = vld [vmem:[#allocation2 + $0x4a] sm:$0xff]
      %v1424 = vld [vmem:[#allocation2 + $0x52] sm:$0xff]
      %v1425 = vld [vmem:[#allocation2 + $0x6a] sm:$0xff]
      %v1426 = vld [vmem:[#allocation2 + $0x72] sm:$0xff]
      %v1427 = vld [vmem:[#allocation2 + $0x8a] sm:$0xff]
      %v1428 = vld [vmem:[#allocation2 + $0x92] sm:$0xff]
      %v1429 = vld [vmem:[#allocation2 + $0xaa] sm:$0xff]
      %v1430 = vld [vmem:[#allocation2 + $0xb2] sm:$0xff]
      %v1431 = vld [vmem:[#allocation2 + $0xca] sm:$0xff]
      %v1432 = vld [vmem:[#allocation2 + $0xd2] sm:$0xff]
      %v1433 = vld [vmem:[#allocation2 + $0xea] sm:$0xff]
      %v1434 = vld [vmem:[#allocation2 + $0xf2] sm:$0xff]
      %v1435 = vld [vmem:[#allocation2 + $0x10a] sm:$0xff]
      %v1436 = vld [vmem:[#allocation2 + $0x112] sm:$0xff]
      %v1437 = vld [vmem:[#allocation2 + $0x12a] sm:$0xff]
      %v1438 = vld [vmem:[#allocation2 + $0x132] sm:$0xff]
      %v1439 = vld [vmem:[#allocation2 + $0x14a] sm:$0xff]
      %v1440 = vld [vmem:[#allocation2 + $0x152] sm:$0xff]
      %v1441 = vld [vmem:[#allocation2 + $0x16a] sm:$0xff]
      %v1442 = vld [vmem:[#allocation2 + $0x172] sm:$0xff]
      %v1443 = vld [vmem:[#allocation2 + $0x18a] sm:$0xff]
      %v1444 = vld [vmem:[#allocation2 + $0x192] sm:$0xff]
      %v1445 = vld [vmem:[#allocation2 + $0x1aa] sm:$0xff]
      %v1446 = vld [vmem:[#allocation2 + $0x1b2] sm:$0xff]
      %v1447 = vld [vmem:[#allocation2 + $0x1ca] sm:$0xff]
      %v1448 = vld [vmem:[#allocation2 + $0x1d2] sm:$0xff]
      %v1449 = vld [vmem:[#allocation2 + $0x1ea] sm:$0xff]
      %v1450 = vld [vmem:[#allocation2 + $0x1f2] sm:$0xff]
      %v1451 = vld [vmem:[#allocation2 + $0x20a] sm:$0xff]
      %v1452 = vld [vmem:[#allocation2 + $0x212] sm:$0xff]
      %v1453 = vld [vmem:[#allocation2 + $0x22a] sm:$0xff]
      %v1454 = vld [vmem:[#allocation2 + $0x232] sm:$0xff]
      %v1455 = vld [vmem:[#allocation2 + $0x24a] sm:$0xff]
      %v1456 = vld [vmem:[#allocation2 + $0x252] sm:$0xff]
      %v1457 = vld [vmem:[#allocation2 + $0x26a] sm:$0xff]
      %v1458 = vld [vmem:[#allocation2 + $0x272] sm:$0xff]
      %v1459 = vmax.f32 %v1379, %v1419
      %v1460 = vmax.f32 %v1380, %v1420
      %v1461 = vmax.f32 %v1381, %v1421
      %v1462 = vmax.f32 %v1382, %v1422
      %v1463 = vmax.f32 %v1383, %v1423
      %v1464 = vmax.f32 %v1384, %v1424
      %v1465 = vmax.f32 %v1385, %v1425
      %v1466 = vmax.f32 %v1386, %v1426
      %v1467 = vmax.f32 %v1387, %v1427
      %v1468 = vmax.f32 %v1388, %v1428
      %v1469 = vmax.f32 %v1389, %v1429
      %v1470 = vmax.f32 %v1390, %v1430
      %v1471 = vmax.f32 %v1391, %v1431
      %v1472 = vmax.f32 %v1392, %v1432
      %v1473 = vmax.f32 %v1393, %v1433
      %v1474 = vmax.f32 %v1394, %v1434
      %v1475 = vmax.f32 %v1395, %v1435
      %v1476 = vmax.f32 %v1396, %v1436
      %v1477 = vmax.f32 %v1397, %v1437
      %v1478 = vmax.f32 %v1398, %v1438
      %v1479 = vmax.f32 %v1399, %v1439
      %v1480 = vmax.f32 %v1400, %v1440
      %v1481 = vmax.f32 %v1401, %v1441
      %v1482 = vmax.f32 %v1402, %v1442
      %v1483 = vmax.f32 %v1403, %v1443
      %v1484 = vmax.f32 %v1404, %v1444
      %v1485 = vmax.f32 %v1405, %v1445
      %v1486 = vmax.f32 %v1406, %v1446
      %v1487 = vmax.f32 %v1407, %v1447
      %v1488 = vmax.f32 %v1408, %v1448
      %v1489 = vmax.f32 %v1409, %v1449
      %v1490 = vmax.f32 %v1410, %v1450
      %v1491 = vmax.f32 %v1411, %v1451
      %v1492 = vmax.f32 %v1412, %v1452
      %v1493 = vmax.f32 %v1413, %v1453
      %v1494 = vmax.f32 %v1414, %v1454
      %v1495 = vmax.f32 %v1415, %v1455
      %v1496 = vmax.f32 %v1416, %v1456
      %v1497 = vmax.f32 %v1417, %v1457
      %v1498 = vmax.f32 %v1418, %v1458
      %v1499 = vmax.f32 %v1463, %v1459
      %v1500 = vmax.f32 %v1464, %v1460
      %v1501 = vmax.f32 %v1465, %v1461
      %v1502 = vmax.f32 %v1466, %v1462
      %v1503 = vmax.f32 %v1467, %v1463
      %v1504 = vmax.f32 %v1468, %v1464
      %v1505 = vmax.f32 %v1469, %v1465
      %v1506 = vmax.f32 %v1470, %v1466
      %v1507 = vmax.f32 %v1471, %v1467
      %v1508 = vmax.f32 %v1472, %v1468
      %v1509 = vmax.f32 %v1473, %v1469
      %v1510 = vmax.f32 %v1474, %v1470
      %v1511 = vmax.f32 %v1475, %v1471
      %v1512 = vmax.f32 %v1476, %v1472
      %v1513 = vmax.f32 %v1477, %v1473
      %v1514 = vmax.f32 %v1478, %v1474
      %v1515 = vmax.f32 %v1479, %v1475
      %v1516 = vmax.f32 %v1480, %v1476
      %v1517 = vmax.f32 %v1481, %v1477
      %v1518 = vmax.f32 %v1482, %v1478
      %v1519 = vmax.f32 %v1483, %v1479
      %v1520 = vmax.f32 %v1484, %v1480
      %v1521 = vmax.f32 %v1485, %v1481
      %v1522 = vmax.f32 %v1486, %v1482
      %v1523 = vmax.f32 %v1487, %v1483
      %v1524 = vmax.f32 %v1488, %v1484
      %v1525 = vmax.f32 %v1489, %v1485
      %v1526 = vmax.f32 %v1490, %v1486
      %v1527 = vmax.f32 %v1491, %v1487
      %v1528 = vmax.f32 %v1492, %v1488
      %v1529 = vmax.f32 %v1493, %v1489
      %v1530 = vmax.f32 %v1494, %v1490
      %v1531 = vmax.f32 %v1499, %v1461
      %v1532 = vmax.f32 %v1500, %v1462
      %v1533 = vmax.f32 %v1501, %v1463
      %v1534 = vmax.f32 %v1502, %v1464
      %v1535 = vmax.f32 %v1503, %v1465
      %v1536 = vmax.f32 %v1504, %v1466
      %v1537 = vmax.f32 %v1505, %v1467
      %v1538 = vmax.f32 %v1506, %v1468
      %v1539 = vmax.f32 %v1507, %v1469
      %v1540 = vmax.f32 %v1508, %v1470
      %v1541 = vmax.f32 %v1509, %v1471
      %v1542 = vmax.f32 %v1510, %v1472
      %v1543 = vmax.f32 %v1511, %v1473
      %v1544 = vmax.f32 %v1512, %v1474
      %v1545 = vmax.f32 %v1513, %v1475
      %v1546 = vmax.f32 %v1514, %v1476
      %v1547 = vmax.f32 %v1515, %v1477
      %v1548 = vmax.f32 %v1516, %v1478
      %v1549 = vmax.f32 %v1517, %v1479
      %v1550 = vmax.f32 %v1518, %v1480
      %v1551 = vmax.f32 %v1519, %v1481
      %v1552 = vmax.f32 %v1520, %v1482
      %v1553 = vmax.f32 %v1521, %v1483
      %v1554 = vmax.f32 %v1522, %v1484
      %v1555 = vmax.f32 %v1523, %v1485
      %v1556 = vmax.f32 %v1524, %v1486
      %v1557 = vmax.f32 %v1525, %v1487
      %v1558 = vmax.f32 %v1526, %v1488
      %v1559 = vmax.f32 %v1527, %v1489
      %v1560 = vmax.f32 %v1528, %v1490
      %v1561 = vmax.f32 %v1529, %v1491
      %v1562 = vmax.f32 %v1530, %v1492
      %v1563 = vmax.f32 %v1531, %v1465
      %v1564 = vmax.f32 %v1532, %v1466
      %v1565 = vmax.f32 %v1533, %v1467
      %v1566 = vmax.f32 %v1534, %v1468
      %v1567 = vmax.f32 %v1535, %v1469
      %v1568 = vmax.f32 %v1536, %v1470
      %v1569 = vmax.f32 %v1537, %v1471
      %v1570 = vmax.f32 %v1538, %v1472
      %v1571 = vmax.f32 %v1539, %v1473
      %v1572 = vmax.f32 %v1540, %v1474
      %v1573 = vmax.f32 %v1541, %v1475
      %v1574 = vmax.f32 %v1542, %v1476
      %v1575 = vmax.f32 %v1543, %v1477
      %v1576 = vmax.f32 %v1544, %v1478
      %v1577 = vmax.f32 %v1545, %v1479
      %v1578 = vmax.f32 %v1546, %v1480
      %v1579 = vmax.f32 %v1547, %v1481
      %v1580 = vmax.f32 %v1548, %v1482
      %v1581 = vmax.f32 %v1549, %v1483
      %v1582 = vmax.f32 %v1550, %v1484
      %v1583 = vmax.f32 %v1551, %v1485
      %v1584 = vmax.f32 %v1552, %v1486
      %v1585 = vmax.f32 %v1553, %v1487
      %v1586 = vmax.f32 %v1554, %v1488
      %v1587 = vmax.f32 %v1555, %v1489
      %v1588 = vmax.f32 %v1556, %v1490
      %v1589 = vmax.f32 %v1557, %v1491
      %v1590 = vmax.f32 %v1558, %v1492
      %v1591 = vmax.f32 %v1559, %v1493
      %v1592 = vmax.f32 %v1560, %v1494
      %v1593 = vmax.f32 %v1561, %v1495
      %v1594 = vmax.f32 %v1562, %v1496
      %v1595 = vmax.f32 %v1563, %v1467
      %v1596 = vmax.f32 %v1564, %v1468
      %v1597 = vmax.f32 %v1565, %v1469
      %v1598 = vmax.f32 %v1566, %v1470
      %v1599 = vmax.f32 %v1567, %v1471
      %v1600 = vmax.f32 %v1568, %v1472
      %v1601 = vmax.f32 %v1569, %v1473
      %v1602 = vmax.f32 %v1570, %v1474
      %v1603 = vmax.f32 %v1571, %v1475
      %v1604 = vmax.f32 %v1572, %v1476
      %v1605 = vmax.f32 %v1573, %v1477
      %v1606 = vmax.f32 %v1574, %v1478
      %v1607 = vmax.f32 %v1575, %v1479
      %v1608 = vmax.f32 %v1576, %v1480
      %v1609 = vmax.f32 %v1577, %v1481
      %v1610 = vmax.f32 %v1578, %v1482
      %v1611 = vmax.f32 %v1579, %v1483
      %v1612 = vmax.f32 %v1580, %v1484
      %v1613 = vmax.f32 %v1581, %v1485
      %v1614 = vmax.f32 %v1582, %v1486
      %v1615 = vmax.f32 %v1583, %v1487
      %v1616 = vmax.f32 %v1584, %v1488
      %v1617 = vmax.f32 %v1585, %v1489
      %v1618 = vmax.f32 %v1586, %v1490
      %v1619 = vmax.f32 %v1587, %v1491
      %v1620 = vmax.f32 %v1588, %v1492
      %v1621 = vmax.f32 %v1589, %v1493
      %v1622 = vmax.f32 %v1590, %v1494
      %v1623 = vmax.f32 %v1591, %v1495
      %v1624 = vmax.f32 %v1592, %v1496
      %v1625 = vmax.f32 %v1593, %v1497
      %v1626 = vmax.f32 %v1594, %v1498
      %v1627 = vpack.c.bf16 %v1596, %v1595
      %v1628 = vpack.c.bf16 %v1598, %v1597
      %v1629 = vpack.c.bf16 %v1600, %v1599
      %v1630 = vpack.c.bf16 %v1602, %v1601
      %v1631 = vpack.c.bf16 %v1604, %v1603
      %v1632 = vpack.c.bf16 %v1606, %v1605
      %v1633 = vpack.c.bf16 %v1608, %v1607
      %v1634 = vpack.c.bf16 %v1610, %v1609
      %v1635 = vpack.c.bf16 %v1612, %v1611
      %v1636 = vpack.c.bf16 %v1614, %v1613
      %v1637 = vpack.c.bf16 %v1616, %v1615
      %v1638 = vpack.c.bf16 %v1618, %v1617
      %v1639 = vpack.c.bf16 %v1620, %v1619
      %v1640 = vpack.c.bf16 %v1622, %v1621
      %v1641 = vpack.c.bf16 %v1624, %v1623
      %v1642 = vpack.c.bf16 %v1626, %v1625
      %s1643 = scalar_lea.vmem %s1, 2
      %v1644 = vld [vmem:[%s1643] sm:$0x3]
      %v1646 = vsel %vm218, %v1627, 0
      %v1649 = vsel %vm218, %v1628, 0
      %v1652 = vsel %vm218, %v1629, 0
      %v1655 = vsel %vm218, %v1630, 0
      %v1658 = vsel %vm218, %v1631, 0
      %v1661 = vsel %vm218, %v1632, 0
      %v1664 = vsel %vm218, %v1633, 0
      %v1667 = vsel %vm218, %v1634, 0
      %v1670 = vsel %vm218, %v1635, 0
      %v1673 = vsel %vm218, %v1636, 0
      %v1676 = vsel %vm218, %v1637, 0
      %v1679 = vsel %vm218, %v1638, 0
      %v1682 = vsel %vm218, %v1639, 0
      %v1685 = vsel %vm218, %v1640, 0
      %v1688 = vsel %vm218, %v1641, 0
      %v1691 = vsel %vm218, %v1642, 0
      %v1694 = vsel %vm846, %v1644, 0
      %1696 = vmatprep.subr.bf16.mxu0 0
      %1697 = vmatpush1.bf16.msra.mxu0 %v1694
      %1698 = vmatprep.subr.bf16.mxu0 0
      %1699 = vmatpush1.bf16.msra.mxu0 0
      %1700 = vmatprep.subr.bf16.mxu0 0
      %1701 = vmatpush1.bf16.msra.mxu0 0
      %1702 = vmatprep.subr.bf16.mxu0 0
      %1703 = vmatpush1.bf16.msra.mxu0 0
      %1704 = vmatprep.subr.bf16.mxu0 0
      %1705 = vmatpush1.bf16.msra.mxu0 0
      %1706 = vmatprep.subr.bf16.mxu0 0
      %1707 = vmatpush1.bf16.msra.mxu0 0
      %1708 = vmatprep.subr.bf16.mxu0 0
      %1709 = vmatpush1.bf16.msra.mxu0 0
      %1710 = vmatprep.subr.bf16.mxu0 0
      %1711 = vmatpush1.bf16.msra.mxu0 0
      %1712 = vmatprep.subr.bf16.mxu0 0
      %1713 = vmatpush1.bf16.msra.mxu0 0
      %1714 = vmatprep.subr.bf16.mxu0 0
      %1715 = vmatpush1.bf16.msra.mxu0 0
      %1716 = vmatprep.subr.bf16.mxu0 0
      %1717 = vmatpush1.bf16.msra.mxu0 0
      %1718 = vmatprep.subr.bf16.mxu0 0
      %1719 = vmatpush1.bf16.msra.mxu0 0
      %1720 = vmatprep.subr.bf16.mxu0 0
      %1721 = vmatpush1.bf16.msra.mxu0 0
      %1722 = vmatprep.subr.bf16.mxu0 0
      %1723 = vmatpush1.bf16.msra.mxu0 0
      %1724 = vmatprep.subr.bf16.mxu0 0
      %1725 = vmatpush1.bf16.msra.mxu0 0
      %1726 = vmatprep.subr.bf16.mxu0 0
      %1727 = vmatpush1.bf16.msra.mxu0 0
      %1728 = vmatprep.mubr.bf16.mxu0 0
      %1729 = vmatmul.mubr.bf16.gmra.mrb[0].mxu0 %v1646
      %v1730 = vpop.f32.mrb[0].mxu0
      %v1731 = vadd.f32 0.0, %v1730
      %v1732 = vpop.f32.mrb[0].mxu0
      %v1733 = vpop.f32.mrb[0].mxu0
      %v1734 = vadd.f32 0.0, %v1733
      %v1735 = vpop.f32.mrb[0].mxu0
      %1736 = vmatprep.mubr.bf16.mxu0 0
      %1737 = vmatmul.mubr.bf16.gmra.mrb[0].mxu0 %v1649
      %v1738 = vpop.f32.mrb[0].mxu0
      %v1739 = vadd.f32 0.0, %v1738
      %v1740 = vpop.f32.mrb[0].mxu0
      %v1741 = vpop.f32.mrb[0].mxu0
      %v1742 = vadd.f32 0.0, %v1741
      %v1743 = vpop.f32.mrb[0].mxu0
      %1744 = vmatprep.mubr.bf16.mxu0 0
      %1745 = vmatmul.mubr.bf16.gmra.mrb[0].mxu0 %v1652
      %v1746 = vpop.f32.mrb[0].mxu0
      %v1747 = vadd.f32 0.0, %v1746
      %v1748 = vpop.f32.mrb[0].mxu0
      %v1749 = vpop.f32.mrb[0].mxu0
      %v1750 = vadd.f32 0.0, %v1749
      %v1751 = vpop.f32.mrb[0].mxu0
      %1752 = vmatprep.mubr.bf16.mxu0 0
      %1753 = vmatmul.mubr.bf16.gmra.mrb[0].mxu0 %v1655
      %v1754 = vpop.f32.mrb[0].mxu0
      %v1755 = vadd.f32 0.0, %v1754
      %v1756 = vpop.f32.mrb[0].mxu0
      %v1757 = vpop.f32.mrb[0].mxu0
      %v1758 = vadd.f32 0.0, %v1757
      %v1759 = vpop.f32.mrb[0].mxu0
      %1760 = vmatprep.mubr.bf16.mxu0 0
      %1761 = vmatmul.mubr.bf16.gmra.mrb[0].mxu0 %v1658
      %v1762 = vpop.f32.mrb[0].mxu0
      %v1763 = vadd.f32 0.0, %v1762
      %v1764 = vpop.f32.mrb[0].mxu0
      %v1765 = vpop.f32.mrb[0].mxu0
      %v1766 = vadd.f32 0.0, %v1765
      %v1767 = vpop.f32.mrb[0].mxu0
      %1768 = vmatprep.mubr.bf16.mxu0 0
      %1769 = vmatmul.mubr.bf16.gmra.mrb[0].mxu0 %v1661
      %v1770 = vpop.f32.mrb[0].mxu0
      %v1771 = vadd.f32 0.0, %v1770
      %v1772 = vpop.f32.mrb[0].mxu0
      %v1773 = vpop.f32.mrb[0].mxu0
      %v1774 = vadd.f32 0.0, %v1773
      %v1775 = vpop.f32.mrb[0].mxu0
      %1776 = vmatprep.mubr.bf16.mxu0 0
      %1777 = vmatmul.mubr.bf16.gmra.mrb[0].mxu0 %v1664
      %v1778 = vpop.f32.mrb[0].mxu0
      %v1779 = vadd.f32 0.0, %v1778
      %v1780 = vpop.f32.mrb[0].mxu0
      %v1781 = vpop.f32.mrb[0].mxu0
      %v1782 = vadd.f32 0.0, %v1781
      %v1783 = vpop.f32.mrb[0].mxu0
      %1784 = vmatprep.mubr.bf16.mxu0 0
      %1785 = vmatmul.mubr.bf16.gmra.mrb[0].mxu0 %v1667
      %v1786 = vpop.f32.mrb[0].mxu0
      %v1787 = vadd.f32 0.0, %v1786
      %v1788 = vpop.f32.mrb[0].mxu0
      %v1789 = vpop.f32.mrb[0].mxu0
      %v1790 = vadd.f32 0.0, %v1789
      %v1791 = vpop.f32.mrb[0].mxu0
      %1792 = vmatprep.mubr.bf16.mxu0 0
      %1793 = vmatmul.mubr.bf16.gmra.mrb[0].mxu0 %v1670
      %v1794 = vpop.f32.mrb[0].mxu0
      %v1795 = vadd.f32 0.0, %v1794
      %v1796 = vpop.f32.mrb[0].mxu0
      %v1797 = vpop.f32.mrb[0].mxu0
      %v1798 = vadd.f32 0.0, %v1797
      %v1799 = vpop.f32.mrb[0].mxu0
      %1800 = vmatprep.mubr.bf16.mxu0 0
      %1801 = vmatmul.mubr.bf16.gmra.mrb[0].mxu0 %v1673
      %v1802 = vpop.f32.mrb[0].mxu0
      %v1803 = vadd.f32 0.0, %v1802
      %v1804 = vpop.f32.mrb[0].mxu0
      %v1805 = vpop.f32.mrb[0].mxu0
      %v1806 = vadd.f32 0.0, %v1805
      %v1807 = vpop.f32.mrb[0].mxu0
      %1808 = vmatprep.mubr.bf16.mxu0 0
      %1809 = vmatmul.mubr.bf16.gmra.mrb[0].mxu0 %v1676
      %v1810 = vpop.f32.mrb[0].mxu0
      %v1811 = vadd.f32 0.0, %v1810
      %v1812 = vpop.f32.mrb[0].mxu0
      %v1813 = vpop.f32.mrb[0].mxu0
      %v1814 = vadd.f32 0.0, %v1813
      %v1815 = vpop.f32.mrb[0].mxu0
      %1816 = vmatprep.mubr.bf16.mxu0 0
      %1817 = vmatmul.mubr.bf16.gmra.mrb[0].mxu0 %v1679
      %v1818 = vpop.f32.mrb[0].mxu0
      %v1819 = vadd.f32 0.0, %v1818
      %v1820 = vpop.f32.mrb[0].mxu0
      %v1821 = vpop.f32.mrb[0].mxu0
      %v1822 = vadd.f32 0.0, %v1821
      %v1823 = vpop.f32.mrb[0].mxu0
      %1824 = vmatprep.mubr.bf16.mxu0 0
      %1825 = vmatmul.mubr.bf16.gmra.mrb[0].mxu0 %v1682
      %v1826 = vpop.f32.mrb[0].mxu0
      %v1827 = vadd.f32 0.0, %v1826
      %v1828 = vpop.f32.mrb[0].mxu0
      %v1829 = vpop.f32.mrb[0].mxu0
      %v1830 = vadd.f32 0.0, %v1829
      %v1831 = vpop.f32.mrb[0].mxu0
      %1832 = vmatprep.mubr.bf16.mxu0 0
      %1833 = vmatmul.mubr.bf16.gmra.mrb[0].mxu0 %v1685
      %v1834 = vpop.f32.mrb[0].mxu0
      %v1835 = vadd.f32 0.0, %v1834
      %v1836 = vpop.f32.mrb[0].mxu0
      %v1837 = vpop.f32.mrb[0].mxu0
      %v1838 = vadd.f32 0.0, %v1837
      %v1839 = vpop.f32.mrb[0].mxu0
      %1840 = vmatprep.mubr.bf16.mxu0 0
      %1841 = vmatmul.mubr.bf16.gmra.mrb[0].mxu0 %v1688
      %v1842 = vpop.f32.mrb[0].mxu0
      %v1843 = vadd.f32 0.0, %v1842
      %v1844 = vpop.f32.mrb[0].mxu0
      %v1845 = vpop.f32.mrb[0].mxu0
      %v1846 = vadd.f32 0.0, %v1845
      %v1847 = vpop.f32.mrb[0].mxu0
      %1848 = vmatprep.mubr.bf16.mxu0 0
      %1849 = vmatmul.mubr.bf16.gmra.mrb[0].mxu0 %v1691
      %v1850 = vpop.f32.mrb[0].mxu0
      %v1851 = vadd.f32 0.0, %v1850
      %v1852 = vpop.f32.mrb[0].mxu0
      %v1853 = vpop.f32.mrb[0].mxu0
      %v1854 = vadd.f32 0.0, %v1853
      %v1855 = vpop.f32.mrb[0].mxu0
      %1856 = vdwg.mxu0
      %v1857 = vld [vmem:[%s143] sm:$0xff]
      %v1858 = vld [vmem:[%s143 + $0x8] sm:$0xff]
      %v1859 = vld [vmem:[%s143 + $0x10] sm:$0xff]
      %v1860 = vld [vmem:[%s143 + $0x18] sm:$0xff]
      %v1861 = vld [vmem:[%s143 + $0x20] sm:$0xff]
      %v1862 = vld [vmem:[%s143 + $0x28] sm:$0xff]
      %v1863 = vld [vmem:[%s143 + $0x30] sm:$0xff]
      %v1864 = vld [vmem:[%s143 + $0x38] sm:$0xff]
      %v1865 = vld [vmem:[%s143 + $0x40] sm:$0xff]
      %v1866 = vld [vmem:[%s143 + $0x48] sm:$0xff]
      %v1867 = vld [vmem:[%s143 + $0x50] sm:$0xff]
      %v1868 = vld [vmem:[%s143 + $0x58] sm:$0xff]
      %v1869 = vld [vmem:[%s143 + $0x60] sm:$0xff]
      %v1870 = vld [vmem:[%s143 + $0x68] sm:$0xff]
      %v1871 = vld [vmem:[%s143 + $0x70] sm:$0xff]
      %v1872 = vld [vmem:[%s143 + $0x78] sm:$0xff]
      %v1873 = vld [vmem:[%s143 + $0x80] sm:$0xff]
      %v1874 = vld [vmem:[%s143 + $0x88] sm:$0xff]
      %v1875 = vld [vmem:[%s143 + $0x90] sm:$0xff]
      %v1876 = vld [vmem:[%s143 + $0x98] sm:$0xff]
      %v1877 = vld [vmem:[%s143 + $0xa0] sm:$0xff]
      %v1878 = vld [vmem:[%s143 + $0xa8] sm:$0xff]
      %v1879 = vld [vmem:[%s143 + $0xb0] sm:$0xff]
      %v1880 = vld [vmem:[%s143 + $0xb8] sm:$0xff]
      %v1881 = vld [vmem:[%s143 + $0xc0] sm:$0xff]
      %v1882 = vld [vmem:[%s143 + $0xc8] sm:$0xff]
      %v1883 = vld [vmem:[%s143 + $0xd0] sm:$0xff]
      %v1884 = vld [vmem:[%s143 + $0xd8] sm:$0xff]
      %v1885 = vld [vmem:[%s143 + $0xe0] sm:$0xff]
      %v1886 = vld [vmem:[%s143 + $0xe8] sm:$0xff]
      %v1887 = vld [vmem:[%s143 + $0xf0] sm:$0xff]
      %v1888 = vld [vmem:[%s143 + $0xf8] sm:$0xff]
      %v1889 = vadd.f32 %v1857, %v1731
      %v1890 = vadd.f32 %v1858, %v1734
      %v1891 = vadd.f32 %v1859, %v1739
      %v1892 = vadd.f32 %v1860, %v1742
      %v1893 = vadd.f32 %v1861, %v1747
      %v1894 = vadd.f32 %v1862, %v1750
      %v1895 = vadd.f32 %v1863, %v1755
      %v1896 = vadd.f32 %v1864, %v1758
      %v1897 = vadd.f32 %v1865, %v1763
      %v1898 = vadd.f32 %v1866, %v1766
      %v1899 = vadd.f32 %v1867, %v1771
      %v1900 = vadd.f32 %v1868, %v1774
      %v1901 = vadd.f32 %v1869, %v1779
      %v1902 = vadd.f32 %v1870, %v1782
      %v1903 = vadd.f32 %v1871, %v1787
      %v1904 = vadd.f32 %v1872, %v1790
      %v1905 = vadd.f32 %v1873, %v1795
      %v1906 = vadd.f32 %v1874, %v1798
      %v1907 = vadd.f32 %v1875, %v1803
      %v1908 = vadd.f32 %v1876, %v1806
      %v1909 = vadd.f32 %v1877, %v1811
      %v1910 = vadd.f32 %v1878, %v1814
      %v1911 = vadd.f32 %v1879, %v1819
      %v1912 = vadd.f32 %v1880, %v1822
      %v1913 = vadd.f32 %v1881, %v1827
      %v1914 = vadd.f32 %v1882, %v1830
      %v1915 = vadd.f32 %v1883, %v1835
      %v1916 = vadd.f32 %v1884, %v1838
      %v1917 = vadd.f32 %v1885, %v1843
      %v1918 = vadd.f32 %v1886, %v1846
      %v1919 = vadd.f32 %v1887, %v1851
      %v1920 = vadd.f32 %v1888, %v1854
      %1921 = vst.msk [vmem:[%s143] sm:$0xff] %vm218, %v1889
      %1922 = vst.msk [vmem:[%s143 + $0x8] sm:$0xff] %vm218, %v1890
      %1923 = vst.msk [vmem:[%s143 + $0x10] sm:$0xff] %vm218, %v1891
      %1924 = vst.msk [vmem:[%s143 + $0x18] sm:$0xff] %vm218, %v1892
      %1925 = vst.msk [vmem:[%s143 + $0x20] sm:$0xff] %vm218, %v1893
      %1926 = vst.msk [vmem:[%s143 + $0x28] sm:$0xff] %vm218, %v1894
      %1927 = vst.msk [vmem:[%s143 + $0x30] sm:$0xff] %vm218, %v1895
      %1928 = vst.msk [vmem:[%s143 + $0x38] sm:$0xff] %vm218, %v1896
      %1929 = vst.msk [vmem:[%s143 + $0x40] sm:$0xff] %vm218, %v1897
      %1930 = vst.msk [vmem:[%s143 + $0x48] sm:$0xff] %vm218, %v1898
      %1931 = vst.msk [vmem:[%s143 + $0x50] sm:$0xff] %vm218, %v1899
      %1932 = vst.msk [vmem:[%s143 + $0x58] sm:$0xff] %vm218, %v1900
      %1933 = vst.msk [vmem:[%s143 + $0x60] sm:$0xff] %vm218, %v1901
      %1934 = vst.msk [vmem:[%s143 + $0x68] sm:$0xff] %vm218, %v1902
      %1935 = vst.msk [vmem:[%s143 + $0x70] sm:$0xff] %vm218, %v1903
      %1936 = vst.msk [vmem:[%s143 + $0x78] sm:$0xff] %vm218, %v1904
      %1937 = vst.msk [vmem:[%s143 + $0x80] sm:$0xff] %vm218, %v1905
      %1938 = vst.msk [vmem:[%s143 + $0x88] sm:$0xff] %vm218, %v1906
      %1939 = vst.msk [vmem:[%s143 + $0x90] sm:$0xff] %vm218, %v1907
      %1940 = vst.msk [vmem:[%s143 + $0x98] sm:$0xff] %vm218, %v1908
      %1941 = vst.msk [vmem:[%s143 + $0xa0] sm:$0xff] %vm218, %v1909
      %1942 = vst.msk [vmem:[%s143 + $0xa8] sm:$0xff] %vm218, %v1910
      %1943 = vst.msk [vmem:[%s143 + $0xb0] sm:$0xff] %vm218, %v1911
      %1944 = vst.msk [vmem:[%s143 + $0xb8] sm:$0xff] %vm218, %v1912
      %1945 = vst.msk [vmem:[%s143 + $0xc0] sm:$0xff] %vm218, %v1913
      %1946 = vst.msk [vmem:[%s143 + $0xc8] sm:$0xff] %vm218, %v1914
      %1947 = vst.msk [vmem:[%s143 + $0xd0] sm:$0xff] %vm218, %v1915
      %1948 = vst.msk [vmem:[%s143 + $0xd8] sm:$0xff] %vm218, %v1916
      %1949 = vst.msk [vmem:[%s143 + $0xe0] sm:$0xff] %vm218, %v1917
      %1950 = vst.msk [vmem:[%s143 + $0xe8] sm:$0xff] %vm218, %v1918
      %1951 = vst.msk [vmem:[%s143 + $0xf0] sm:$0xff] %vm218, %v1919
      %1952 = vst.msk [vmem:[%s143 + $0xf8] sm:$0xff] %vm218, %v1920
      %p1953 = scmp.lt.s32.totalorder %s13, 1
      %s1954 = scalar_select %p1953, %s13, 1
      %s1955 = smul.addr %s1954, 32
      %s1956 = smul.addr %s1955, 8
      %s1957 = scalar_lea.vmem %s2, %s1956
      // Predicated region
      $region29: #{tpu_custom_call.1} parent=27 // pred_check
        %p1958 = pneg %p78
      $region30: #{tpu_custom_call.1} parent=27 // pred_check_branch
        %1960 = sbr.rel (%p1958) target = $region32
      $region31: #{tpu_custom_call.1} parent=27 // pred_region
        _
      $region32: #{tpu_custom_call.1} parent=27 // pred_fallthru
        _
    $region28: #{tpu_custom_call.1} parent=5 // pred_fallthru
      _
    %p1961 = scmp.le.s32.totalorder 2, %s8
    // Predicated region
    $region33: #{tpu_custom_call.1} parent=5 // pred_check
      %p1962 = pneg %p1961
    $region34: #{tpu_custom_call.1} parent=5 // pred_check_branch
      %1964 = sbr.rel (%p1962) target = $region36
    $region35: #{tpu_custom_call.1} parent=5 // pred_region
      %s1965 = ssub.s32 %s8, 2
      // Predicated region
      $region37: #{tpu_custom_call.1} parent=35 // pred_check
        %p1966 = pneg %p84
      $region38: #{tpu_custom_call.1} parent=35 // pred_check_branch
        %1968 = sbr.rel (%p1966) target = $region40
      $region39: #{tpu_custom_call.1} parent=35 // pred_region
        %p1969 = scmp.lt.s32.totalorder %s14, 1
        %s1970 = scalar_select %p1969, %s14, 1
        %s1971 = smul.addr %s1970, 32
        %s1972 = smul.addr %s1971, 8
        %s1973 = scalar_lea.vmem %s2, %s1972
      $region40: #{tpu_custom_call.1} parent=35 // pred_fallthru
        _
    $region36: #{tpu_custom_call.1} parent=5 // pred_fallthru
      _
  $region6: #{tpu_custom_call.1} parent=0 // loop_footer
    %s12 = sadd.s32 1, %s8
  $region7: #{tpu_custom_call.1} parent=0 // loop_footer_branch
    %7 = sbr.rel target = $region3
  $region8: #{tpu_custom_call.1} parent=0 // loop_exit
    _

</llo_original>
